<compile_context>
chip_gen: v7x
topology: tpu7x:2x2x1
jax: 0.10.0
libtpu: 0.0.40
codegen_flags: <defaults>
</compile_context>

<pallas_src>
import functools

import jax
import jax.numpy as jnp
from jax.experimental import pallas as pl
from jax.experimental.pallas import tpu as pltpu


def _round_up(x: int, m: int) -> int:
    return (x + m - 1) // m * m


def _order_emb_kernel(order_ref, inv_freq_ref, out_ref, *, k, demb, half):
    # order_ref:    (TR, k)      float32 -- k flattened (S*B) order values per output row
    # inv_freq_ref: (1, half)    float32 -- grid-invariant frequency row
    # out_ref:      (TR, k*demb) float32 -- lane-dense packed output tile
    ord_blk = order_ref[...]
    freq = inv_freq_ref[...]
    # k is a small static constant (1 for demb >= 256); unrolled python loop.
    for j in range(k):
        # Outer product via broadcast: (TR, 1) * (1, half) -> (TR, half)
        sinusoid = ord_blk[:, j:j + 1] * freq
        base = j * demb
        # Two direct slice stores: no minor-axis concatenate, no extra VMEM temporary,
        # exactly one transcendental per output element.
        out_ref[:, base:base + half] = jnp.sin(sinusoid)
        out_ref[:, base + half:base + demb] = jnp.cos(sinusoid)


def order_embedding(order_seq: jax.Array, demb: int) -> jax.Array:
    """order_seq: (B, S). Returns pos_emb: (S, B, demb) float32 (matches torch layout)."""
    assert demb % 2 == 0, "demb must be even"
    b, s = order_seq.shape
    half = demb // 2
    rows = s * b

    # Deterministic buffer init (same formula as the torch module).
    inv_freq = 1.0 / (
        10000.0 ** (jnp.arange(0.0, demb, 2.0, dtype=jnp.float32) / demb)
    )
    inv_freq = inv_freq.reshape(1, half)

    # Lane-dense packing factor for small demb: pack k consecutive output rows into one
    # 256-lane output row.  The (rows, demb) output is row-major, so the packed view
    # (rows/k, k*demb) and the final (S, B, demb) reshape are both free/contiguous.
    if 16 <= demb < 256 and 256 % demb == 0 and rows % (256 // demb) == 0:
        k = 256 // demb
    else:
        k = 1
    rows_p = rows // k
    w = k * demb

    # Glue: (B, S) -> (S, B) -> (S*B/k, k).  Row index = i*B + b, so the final reshape back
    # to (S, B, demb) is free/contiguous.  (Tiny XLA op; fuses when the caller jits.)
    order_in = jnp.transpose(order_seq.astype(jnp.float32), (1, 0)).reshape(rows_p, k)

    # Row-tile selection: VMEM-budgeted (~8 MiB output tile) and at least 2 grid steps when
    # possible so both v7x TensorCores get work.  Tiles are multiples of 8 sublanes; the
    # ragged last block (rows_p % tr != 0) is handled by Pallas OOB-write masking -- no pad,
    # no epilogue slice.
    tile_bytes_target = 8 << 20
    tr_budget = min(4096, max(8, (tile_bytes_target // (w * 4)) // 8 * 8))
    if rows_p <= 8:
        tr = rows_p                      # full extent (block == array dim is always legal)
    else:
        tr = max(8, min(tr_budget, _round_up(pl.cdiv(rows_p, 2), 8)))
    grid = (pl.cdiv(rows_p, tr),)

    # VMEM budget: double-buffered output tile + lane-padded (tr,128) order tile + freq row.
    vmem_need = (2 * tr * w + 2 * tr * 128 + 2 * _round_up(half, 128)) * 4 + (2 << 20)
    vmem_limit = int(min(max(vmem_need, 8 << 20), 40 << 20))

    cost = pl.CostEstimate(
        flops=rows * half,                 # one mul per sinusoid element
        transcendentals=rows * demb,       # one sin/cos per output element
        bytes_accessed=rows * demb * 4 + rows * 4 + half * 4,
    )

    kernel = functools.partial(_order_emb_kernel, k=k, demb=demb, half=half)

    out2d = pl.pallas_call(
        kernel,
        out_shape=jax.ShapeDtypeStruct((rows_p, w), jnp.float32),
        grid=grid,
        in_specs=[
            pl.BlockSpec((tr, k), lambda i: (i, 0)),        # order values, tiled over rows
            pl.BlockSpec((1, half), lambda i: (0, 0)),      # inv_freq, grid-invariant
        ],
        out_specs=pl.BlockSpec((tr, w), lambda i: (i, 0)),
        compiler_params=pltpu.CompilerParams(
            dimension_semantics=("parallel",),
            vmem_limit_bytes=vmem_limit,
        ),
        cost_estimate=cost,
    )(order_in, inv_freq)

    # (rows/k, k*demb) == (S*B, demb) in memory order -> contiguous reshape, no slicing.
    return out2d.reshape(s, b, demb)


if __name__ == "__main__":
    key = jax.random.PRNGKey(0)
    B, S, DEMB = 2, 8, 32

    # Synthetic "order" sequence (integer-like positions), deterministic.
    order_seq = jax.random.randint(key, (B, S), 0, 64).astype(jnp.float32)

    order_embedding_jit = jax.jit(order_embedding, static_argnums=1)
    pos_emb = order_embedding_jit(order_seq, DEMB)
    pos_emb = jax.block_until_ready(pos_emb)

    # Reference check in plain JAX (mirrors the torch forward).
    inv_freq_ref = 1.0 / (10000.0 ** (jnp.arange(0.0, DEMB, 2.0) / DEMB))
    sinusoid_ref = jnp.einsum("bi,j->ibj", order_seq, inv_freq_ref)
    ref = jnp.concatenate([jnp.sin(sinusoid_ref), jnp.cos(sinusoid_ref)], axis=-1)

    assert pos_emb.shape == (S, B, DEMB)
    assert jnp.allclose(pos_emb, ref, atol=1e-5, rtol=1e-5)
    print("KERNEL_OK")
</pallas_src>

<mosaic_0001>
module attributes {stable_mosaic.version = 11 : i64} {
  func.func @_order_emb_kernel(%arg0: i32, %arg1: memref<2x8xf32, #tpu.memory_space<vmem>>, %arg2: memref<1x16xf32, #tpu.memory_space<vmem>>, %arg3: memref<2x256xf32, #tpu.memory_space<vmem>>) attributes {dimension_semantics = [#tpu.dimension_semantics<parallel>], iteration_bounds = array<i64: 1>, scalar_prefetch = 0 : i64, scratch_operands = 0 : i64, tpu.core_type = #tpu.core_type<tc>, window_params = [{transform_indices = @transform_0, window_bounds = array<i64: 2, 8>}, {pipeline_mode = #tpu.pipeline_mode<synchronous>, transform_indices = @transform_1, window_bounds = array<i64: 1, 16>}, {transform_indices = @transform_2, window_bounds = array<i64: 2, 256>}]} {
    %c0 = arith.constant 0 : index
    %c0_0 = arith.constant 0 : index
    %0 = vector.load %arg1[%c0, %c0_0] : memref<2x8xf32, #tpu.memory_space<vmem>>, vector<2x8xf32>
    %c0_1 = arith.constant 0 : index
    %c0_2 = arith.constant 0 : index
    %1 = vector.load %arg2[%c0_1, %c0_2] : memref<1x16xf32, #tpu.memory_space<vmem>>, vector<1x16xf32>
    %2 = vector.extract_strided_slice %0 {offsets = [0, 0], sizes = [2, 1], strides = [1, 1]} : vector<2x8xf32> to vector<2x1xf32>
    %3 = vector.broadcast %2 : vector<2x1xf32> to vector<2x16xf32>
    %4 = vector.broadcast %1 : vector<1x16xf32> to vector<2x16xf32>
    %5 = arith.mulf %3, %4 : vector<2x16xf32>
    %6 = math.sin %5 : vector<2x16xf32>
    %c0_3 = arith.constant 0 : index
    %c0_4 = arith.constant 0 : index
    %7 = vector.load %arg3[%c0_3, %c0_4] : memref<2x256xf32, #tpu.memory_space<vmem>>, vector<2x16xf32>
    tpu.vector_store %arg3[%c0_3, %c0_4], %6 {strides = array<i32>} : memref<2x256xf32, #tpu.memory_space<vmem>>, vector<2x16xf32>,
    %8 = math.cos %5 : vector<2x16xf32>
    %c0_5 = arith.constant 0 : index
    %c16 = arith.constant 16 : index
    %9 = vector.load %arg3[%c0_5, %c16] : memref<2x256xf32, #tpu.memory_space<vmem>>, vector<2x16xf32>
    tpu.vector_store %arg3[%c0_5, %c16], %8 {strides = array<i32>} : memref<2x256xf32, #tpu.memory_space<vmem>>, vector<2x16xf32>,
    %10 = vector.extract_strided_slice %0 {offsets = [0, 1], sizes = [2, 1], strides = [1, 1]} : vector<2x8xf32> to vector<2x1xf32>
    %11 = vector.broadcast %10 : vector<2x1xf32> to vector<2x16xf32>
    %12 = vector.broadcast %1 : vector<1x16xf32> to vector<2x16xf32>
    %13 = arith.mulf %11, %12 : vector<2x16xf32>
    %14 = math.sin %13 : vector<2x16xf32>
    %c0_6 = arith.constant 0 : index
    %c32 = arith.constant 32 : index
    %15 = vector.load %arg3[%c0_6, %c32] : memref<2x256xf32, #tpu.memory_space<vmem>>, vector<2x16xf32>
    tpu.vector_store %arg3[%c0_6, %c32], %14 {strides = array<i32>} : memref<2x256xf32, #tpu.memory_space<vmem>>, vector<2x16xf32>,
    %16 = math.cos %13 : vector<2x16xf32>
    %c0_7 = arith.constant 0 : index
    %c48 = arith.constant 48 : index
    %17 = vector.load %arg3[%c0_7, %c48] : memref<2x256xf32, #tpu.memory_space<vmem>>, vector<2x16xf32>
    tpu.vector_store %arg3[%c0_7, %c48], %16 {strides = array<i32>} : memref<2x256xf32, #tpu.memory_space<vmem>>, vector<2x16xf32>,
    %18 = vector.extract_strided_slice %0 {offsets = [0, 2], sizes = [2, 1], strides = [1, 1]} : vector<2x8xf32> to vector<2x1xf32>
    %19 = vector.broadcast %18 : vector<2x1xf32> to vector<2x16xf32>
    %20 = vector.broadcast %1 : vector<1x16xf32> to vector<2x16xf32>
    %21 = arith.mulf %19, %20 : vector<2x16xf32>
    %22 = math.sin %21 : vector<2x16xf32>
    %c0_8 = arith.constant 0 : index
    %c64 = arith.constant 64 : index
    %23 = vector.load %arg3[%c0_8, %c64] : memref<2x256xf32, #tpu.memory_space<vmem>>, vector<2x16xf32>
    tpu.vector_store %arg3[%c0_8, %c64], %22 {strides = array<i32>} : memref<2x256xf32, #tpu.memory_space<vmem>>, vector<2x16xf32>,
    %24 = math.cos %21 : vector<2x16xf32>
    %c0_9 = arith.constant 0 : index
    %c80 = arith.constant 80 : index
    %25 = vector.load %arg3[%c0_9, %c80] : memref<2x256xf32, #tpu.memory_space<vmem>>, vector<2x16xf32>
    tpu.vector_store %arg3[%c0_9, %c80], %24 {strides = array<i32>} : memref<2x256xf32, #tpu.memory_space<vmem>>, vector<2x16xf32>,
    %26 = vector.extract_strided_slice %0 {offsets = [0, 3], sizes = [2, 1], strides = [1, 1]} : vector<2x8xf32> to vector<2x1xf32>
    %27 = vector.broadcast %26 : vector<2x1xf32> to vector<2x16xf32>
    %28 = vector.broadcast %1 : vector<1x16xf32> to vector<2x16xf32>
    %29 = arith.mulf %27, %28 : vector<2x16xf32>
    %30 = math.sin %29 : vector<2x16xf32>
    %c0_10 = arith.constant 0 : index
    %c96 = arith.constant 96 : index
    %31 = vector.load %arg3[%c0_10, %c96] : memref<2x256xf32, #tpu.memory_space<vmem>>, vector<2x16xf32>
    tpu.vector_store %arg3[%c0_10, %c96], %30 {strides = array<i32>} : memref<2x256xf32, #tpu.memory_space<vmem>>, vector<2x16xf32>,
    %32 = math.cos %29 : vector<2x16xf32>
    %c0_11 = arith.constant 0 : index
    %c112 = arith.constant 112 : index
    %33 = vector.load %arg3[%c0_11, %c112] : memref<2x256xf32, #tpu.memory_space<vmem>>, vector<2x16xf32>
    tpu.vector_store %arg3[%c0_11, %c112], %32 {strides = array<i32>} : memref<2x256xf32, #tpu.memory_space<vmem>>, vector<2x16xf32>,
    %34 = vector.extract_strided_slice %0 {offsets = [0, 4], sizes = [2, 1], strides = [1, 1]} : vector<2x8xf32> to vector<2x1xf32>
    %35 = vector.broadcast %34 : vector<2x1xf32> to vector<2x16xf32>
    %36 = vector.broadcast %1 : vector<1x16xf32> to vector<2x16xf32>
    %37 = arith.mulf %35, %36 : vector<2x16xf32>
    %38 = math.sin %37 : vector<2x16xf32>
    %c0_12 = arith.constant 0 : index
    %c128 = arith.constant 128 : index
    %39 = vector.load %arg3[%c0_12, %c128] : memref<2x256xf32, #tpu.memory_space<vmem>>, vector<2x16xf32>
    tpu.vector_store %arg3[%c0_12, %c128], %38 {strides = array<i32>} : memref<2x256xf32, #tpu.memory_space<vmem>>, vector<2x16xf32>,
    %40 = math.cos %37 : vector<2x16xf32>
    %c0_13 = arith.constant 0 : index
    %c144 = arith.constant 144 : index
    %41 = vector.load %arg3[%c0_13, %c144] : memref<2x256xf32, #tpu.memory_space<vmem>>, vector<2x16xf32>
    tpu.vector_store %arg3[%c0_13, %c144], %40 {strides = array<i32>} : memref<2x256xf32, #tpu.memory_space<vmem>>, vector<2x16xf32>,
    %42 = vector.extract_strided_slice %0 {offsets = [0, 5], sizes = [2, 1], strides = [1, 1]} : vector<2x8xf32> to vector<2x1xf32>
    %43 = vector.broadcast %42 : vector<2x1xf32> to vector<2x16xf32>
    %44 = vector.broadcast %1 : vector<1x16xf32> to vector<2x16xf32>
    %45 = arith.mulf %43, %44 : vector<2x16xf32>
    %46 = math.sin %45 : vector<2x16xf32>
    %c0_14 = arith.constant 0 : index
    %c160 = arith.constant 160 : index
    %47 = vector.load %arg3[%c0_14, %c160] : memref<2x256xf32, #tpu.memory_space<vmem>>, vector<2x16xf32>
    tpu.vector_store %arg3[%c0_14, %c160], %46 {strides = array<i32>} : memref<2x256xf32, #tpu.memory_space<vmem>>, vector<2x16xf32>,
    %48 = math.cos %45 : vector<2x16xf32>
    %c0_15 = arith.constant 0 : index
    %c176 = arith.constant 176 : index
    %49 = vector.load %arg3[%c0_15, %c176] : memref<2x256xf32, #tpu.memory_space<vmem>>, vector<2x16xf32>
    tpu.vector_store %arg3[%c0_15, %c176], %48 {strides = array<i32>} : memref<2x256xf32, #tpu.memory_space<vmem>>, vector<2x16xf32>,
    %50 = vector.extract_strided_slice %0 {offsets = [0, 6], sizes = [2, 1], strides = [1, 1]} : vector<2x8xf32> to vector<2x1xf32>
    %51 = vector.broadcast %50 : vector<2x1xf32> to vector<2x16xf32>
    %52 = vector.broadcast %1 : vector<1x16xf32> to vector<2x16xf32>
    %53 = arith.mulf %51, %52 : vector<2x16xf32>
    %54 = math.sin %53 : vector<2x16xf32>
    %c0_16 = arith.constant 0 : index
    %c192 = arith.constant 192 : index
    %55 = vector.load %arg3[%c0_16, %c192] : memref<2x256xf32, #tpu.memory_space<vmem>>, vector<2x16xf32>
    tpu.vector_store %arg3[%c0_16, %c192], %54 {strides = array<i32>} : memref<2x256xf32, #tpu.memory_space<vmem>>, vector<2x16xf32>,
    %56 = math.cos %53 : vector<2x16xf32>
    %c0_17 = arith.constant 0 : index
    %c208 = arith.constant 208 : index
    %57 = vector.load %arg3[%c0_17, %c208] : memref<2x256xf32, #tpu.memory_space<vmem>>, vector<2x16xf32>
    tpu.vector_store %arg3[%c0_17, %c208], %56 {strides = array<i32>} : memref<2x256xf32, #tpu.memory_space<vmem>>, vector<2x16xf32>,
    %58 = vector.extract_strided_slice %0 {offsets = [0, 7], sizes = [2, 1], strides = [1, 1]} : vector<2x8xf32> to vector<2x1xf32>
    %59 = vector.broadcast %58 : vector<2x1xf32> to vector<2x16xf32>
    %60 = vector.broadcast %1 : vector<1x16xf32> to vector<2x16xf32>
    %61 = arith.mulf %59, %60 : vector<2x16xf32>
    %62 = math.sin %61 : vector<2x16xf32>
    %c0_18 = arith.constant 0 : index
    %c224 = arith.constant 224 : index
    %63 = vector.load %arg3[%c0_18, %c224] : memref<2x256xf32, #tpu.memory_space<vmem>>, vector<2x16xf32>
    tpu.vector_store %arg3[%c0_18, %c224], %62 {strides = array<i32>} : memref<2x256xf32, #tpu.memory_space<vmem>>, vector<2x16xf32>,
    %64 = math.cos %61 : vector<2x16xf32>
    %c0_19 = arith.constant 0 : index
    %c240 = arith.constant 240 : index
    %65 = vector.load %arg3[%c0_19, %c240] : memref<2x256xf32, #tpu.memory_space<vmem>>, vector<2x16xf32>
    tpu.vector_store %arg3[%c0_19, %c240], %64 {strides = array<i32>} : memref<2x256xf32, #tpu.memory_space<vmem>>, vector<2x16xf32>,
    return
  }
  func.func @transform_0(%arg0: i32) -> (i32, i32) {
    %c0_i32 = arith.constant 0 : i32
    %c0_i32_0 = arith.constant 0 : i32
    return %arg0, %c0_i32 : i32, i32
  }
  func.func @transform_1(%arg0: i32) -> (i32, i32) {
    %c0_i32 = arith.constant 0 : i32
    %c0_i32_0 = arith.constant 0 : i32
    %c0_i32_1 = arith.constant 0 : i32
    return %c0_i32, %c0_i32_0 : i32, i32
  }
  func.func @transform_2(%arg0: i32) -> (i32, i32) {
    %c0_i32 = arith.constant 0 : i32
    %c0_i32_0 = arith.constant 0 : i32
    return %arg0, %c0_i32 : i32, i32
  }
}

</mosaic_0001>

<llo_original>
// kernel: order_embedding.1
$region0: #{order_embedding.1}
  #allocation0 [shape = 'u32[]', space=smem, size = 0x4, offset = 0x4, fixed_abs, tag = 'smem constant byte address 0x4 - core index']
  #allocation1 [shape = 'u32[144,128]{1,0:T(1,128)}', space=vmem, size = 0x12000, scoped, tag = 'internal scratch']
  %s0 = inlined_call_operand.vmem [shape: f32[2,8], index: 0, kind: input, shape index: {}]
  %s1 = inlined_call_operand.vmem [shape: f32[1,16], index: 1, kind: input, shape index: {}]
  %s2 = inlined_call_operand.vmem [shape: f32[2,256], index: 2, kind: output, shape index: {}]
  %s3 = sld [smem:[#allocation0]]
  $region18: #{order_embedding.1} parent=0
    _
  %s5 = ssub.s32 1, %s3
  %s6 = scalar_select 0, %s5, %s3
  // Predicated region
  $region2: #{order_embedding.1} parent=0 // pred_check
    _
  $region3: #{order_embedding.1} parent=0 // pred_check_branch
    %8 = sbr.rel (0) target = $region5
  $region4: #{order_embedding.1} parent=0 // pred_region
    _
  $region5: #{order_embedding.1} parent=0 // pred_fallthru
    _
  // Predicated region
  $region6: #{order_embedding.1} parent=0 // pred_check
    _
  $region7: #{order_embedding.1} parent=0 // pred_check_branch
    %10 = sbr.rel (0) target = $region9
  $region8: #{order_embedding.1} parent=0 // pred_region
    _
  $region9: #{order_embedding.1} parent=0 // pred_fallthru
    _
  %v11 = vld [vmem:[%s0] sm:$0x3]
  %v12 = vld [vmem:[%s1] sm:$0x1]
  %14 = vset.pattern.permute.xlu0 0
  %15 = vperm.xlu0 %14, %v11
  %v16 = vpop.permute.xlu0 %15
  %v19 = vlaneseq
  %v20 = vshrl.u32 %v19, 7
  %v21 = vsub.s32 0, %v20
  %v22 = vrot.slane %v12, %v21
  %v24 = vmul.f32 %v16, %v22
  %v25 = vand.u32 2147483647, %v24
  %vm26 = vcmp.le.f32.partialorder %v25, 0.7853982
  %vm27 = vcmp.lt.s32.totalorder %v24, 0
  %v28 = vand.u32 %v24, 2139095040
  %v29 = vshrl.u32 %v28, 23
  %v30 = vsub.s32 %v29, 127
  %v31 = vand.u32 2147483647, %v24
  %v32 = vand.u32 %v31, 8388607
  %v33 = vor.u32 %v32, 8388608
  %v34 = vsub.s32 0, %v33
  %v35 = vadd.s32 %v30, 1
  %vm36 = vcmp.gt.s32.totalorder %v35, 0
  %v37 = vsel %vm36, %v35, 0
  %v38 = vshrl.u32 %v37, 5
  %v39 = vand.u32 %v37, 31
  %v40 = vsub.s32 32, %v39
  %v41 = vshrl.u32 683565275, %v40
  %v42 = vshll.u32 683565275, %v39
  %v43 = vshrl.u32 2475754826, %v40
  %v44 = vor.u32 %v42, %v43
  %v45 = vshll.u32 2475754826, %v39
  %v46 = vshrl.u32 2131351028, %v40
  %v47 = vor.u32 %v45, %v46
  %v48 = vshll.u32 2131351028, %v39
  %v49 = vshrl.u32 2102212464, %v40
  %v50 = vor.u32 %v48, %v49
  %v51 = vshll.u32 2102212464, %v39
  %v52 = vshrl.u32 920167782, %v40
  %v53 = vor.u32 %v51, %v52
  %v54 = vshll.u32 920167782, %v39
  %v55 = vshrl.u32 1326507024, %v40
  %v56 = vor.u32 %v54, %v55
  %vm57 = vcmp.lt.s32.totalorder %v38, 1
  %vm58 = vcmp.lt.s32.totalorder %v38, 2
  %vm59 = vcmp.lt.s32.totalorder %v38, 3
  %vm60 = vcmp.lt.s32.totalorder %v38, 4
  %v61 = vsel %vm57, %v41, %v44
  %v62 = vsel %vm60, %v50, 2102212464
  %v63 = vsel %vm59, %v47, %v62
  %v64 = vsel %vm58, %v61, %v63
  %v65 = vsel %vm57, %v44, %v47
  %v66 = vsel %vm60, %v53, 920167782
  %v67 = vsel %vm59, %v50, %v66
  %v68 = vsel %vm58, %v65, %v67
  %v69 = vsel %vm57, %v47, %v50
  %v70 = vsel %vm60, %v56, 1326507024
  %v71 = vsel %vm59, %v53, %v70
  %v72 = vsel %vm58, %v69, %v71
  %v73 = vshll.u32 %v33, 8
  %v74 = vmul.u32.u64.compose %v73, %v72
  %v75 = vextract.low.u32 %v74
  %v76 = vextract.high.u32 %v74
  %v77 = vmul.u32.u64.compose %v73, %v68
  %v78 = vextract.low.u32 %v77
  %v79 = vextract.high.u32 %v77
  %v80 = vmul.u32 %v73, %v64
  %v81 = vadd.s32 %v76, %v78
  %vm82 = vc.u32 %v76, %v78
  %v83 = vadd.s32 %v79, 1
  %v84 = vsel %vm82, %v83, %v79
  %v85 = vadd.s32 %v80, %v84
  %v86 = vadd.s32 %v85, 536870912
  %v87 = vshrl.u32 %v86, 30
  %v88 = vshll.u32 %v87, 30
  %v89 = vsub.s32 %v85, %v88
  %vm90 = vcmp.lt.s32.totalorder %v89, 0
  %v91 = vsub.s32 0, %v89
  %v92 = vsel %vm90, %v91, %v89
  %v93 = vclz %v92
  %v94 = vsub.s32 %v93, 2
  %vm95 = vcmp.gt.s32.totalorder 0, %v94
  %v96 = vsel %vm95, 0, %v94
  %v97 = vsub.s32 32, %v96
  %v98 = vshll.u32 %v89, %v96
  %v99 = vshrl.u32 %v81, %v97
  %v100 = vor.u32 %v98, %v99
  %v101 = vsub.s32 4294967266, %v96
  %v102 = vadd.s32 %v101, 127
  %v103 = vshll.u32 %v102, 23
  %v104 = vor.u32 4788187, %v103
  %v105 = vand.u32 2147483647, %v104
  %v107 = vcvt.s32.f32 %v100
  %v108 = vmul.f32 %v107, %v105
  %v109 = vxor.u32 %v108, 2147483648
  %v110 = vsel %vm27, %v109, %v108
  %v111 = vsub.s32 4, %v87
  %v112 = vsel %vm27, %v111, %v87
  %v113 = vsel %vm26, %v24, %v110
  %v114 = vsel %vm26, 0, %v112
  %v115 = vcosq.f32.pop %v113
  %v116 = vsinq.f32.pop %v113
  %vm117 = vweird.f32 %v24
  %v118 = vadd.s32 %v114, 3
  %v119 = vand.u32 %v118, 3
  %vm120 = vcmp.lt.s32.totalorder %v119, 2
  %vm121 = vcmp.eq.s32.totalorder %v119, 0
  %v122 = vxor.u32 %v116, 2147483648
  %v123 = vsel %vm121, %v115, %v122
  %vm124 = vcmp.eq.s32.totalorder %v119, 2
  %v125 = vxor.u32 %v115, 2147483648
  %v126 = vsel %vm124, %v125, %v116
  %v127 = vsel %vm120, %v123, %v126
  %v128 = vsel %vm117, nan, %v127
  %vm129 = vcmask 123904
  %130 = vst.msk [vmem:[%s2] sm:$0x3] %vm129, %v128
  %v131 = vand.u32 2147483647, %v24
  %vm132 = vcmp.le.f32.partialorder %v131, 0.7853982
  %vm133 = vcmp.lt.s32.totalorder %v24, 0
  %v134 = vand.u32 %v24, 2139095040
  %v135 = vshrl.u32 %v134, 23
  %v136 = vsub.s32 %v135, 127
  %v137 = vand.u32 2147483647, %v24
  %v138 = vand.u32 %v137, 8388607
  %v139 = vor.u32 %v138, 8388608
  %v140 = vsub.s32 0, %v139
  %v141 = vadd.s32 %v136, 1
  %vm142 = vcmp.gt.s32.totalorder %v141, 0
  %v143 = vsel %vm142, %v141, 0
  %v144 = vshrl.u32 %v143, 5
  %v145 = vand.u32 %v143, 31
  %v146 = vsub.s32 32, %v145
  %v147 = vshrl.u32 683565275, %v146
  %v148 = vshll.u32 683565275, %v145
  %v149 = vshrl.u32 2475754826, %v146
  %v150 = vor.u32 %v148, %v149
  %v151 = vshll.u32 2475754826, %v145
  %v152 = vshrl.u32 2131351028, %v146
  %v153 = vor.u32 %v151, %v152
  %v154 = vshll.u32 2131351028, %v145
  %v155 = vshrl.u32 2102212464, %v146
  %v156 = vor.u32 %v154, %v155
  %v157 = vshll.u32 2102212464, %v145
  %v158 = vshrl.u32 920167782, %v146
  %v159 = vor.u32 %v157, %v158
  %v160 = vshll.u32 920167782, %v145
  %v161 = vshrl.u32 1326507024, %v146
  %v162 = vor.u32 %v160, %v161
  %vm163 = vcmp.lt.s32.totalorder %v144, 1
  %vm164 = vcmp.lt.s32.totalorder %v144, 2
  %vm165 = vcmp.lt.s32.totalorder %v144, 3
  %vm166 = vcmp.lt.s32.totalorder %v144, 4
  %v167 = vsel %vm163, %v147, %v150
  %v168 = vsel %vm166, %v156, 2102212464
  %v169 = vsel %vm165, %v153, %v168
  %v170 = vsel %vm164, %v167, %v169
  %v171 = vsel %vm163, %v150, %v153
  %v172 = vsel %vm166, %v159, 920167782
  %v173 = vsel %vm165, %v156, %v172
  %v174 = vsel %vm164, %v171, %v173
  %v175 = vsel %vm163, %v153, %v156
  %v176 = vsel %vm166, %v162, 1326507024
  %v177 = vsel %vm165, %v159, %v176
  %v178 = vsel %vm164, %v175, %v177
  %v179 = vshll.u32 %v139, 8
  %v180 = vmul.u32.u64.compose %v179, %v178
  %v181 = vextract.low.u32 %v180
  %v182 = vextract.high.u32 %v180
  %v183 = vmul.u32.u64.compose %v179, %v174
  %v184 = vextract.low.u32 %v183
  %v185 = vextract.high.u32 %v183
  %v186 = vmul.u32 %v179, %v170
  %v187 = vadd.s32 %v182, %v184
  %vm188 = vc.u32 %v182, %v184
  %v189 = vadd.s32 %v185, 1
  %v190 = vsel %vm188, %v189, %v185
  %v191 = vadd.s32 %v186, %v190
  %v192 = vadd.s32 %v191, 536870912
  %v193 = vshrl.u32 %v192, 30
  %v194 = vshll.u32 %v193, 30
  %v195 = vsub.s32 %v191, %v194
  %vm196 = vcmp.lt.s32.totalorder %v195, 0
  %v197 = vsub.s32 0, %v195
  %v198 = vsel %vm196, %v197, %v195
  %v199 = vclz %v198
  %v200 = vsub.s32 %v199, 2
  %vm201 = vcmp.gt.s32.totalorder 0, %v200
  %v202 = vsel %vm201, 0, %v200
  %v203 = vsub.s32 32, %v202
  %v204 = vshll.u32 %v195, %v202
  %v205 = vshrl.u32 %v187, %v203
  %v206 = vor.u32 %v204, %v205
  %v207 = vsub.s32 4294967266, %v202
  %v208 = vadd.s32 %v207, 127
  %v209 = vshll.u32 %v208, 23
  %v210 = vor.u32 4788187, %v209
  %v211 = vand.u32 2147483647, %v210
  %v213 = vcvt.s32.f32 %v206
  %v214 = vmul.f32 %v213, %v211
  %v215 = vxor.u32 %v214, 2147483648
  %v216 = vsel %vm133, %v215, %v214
  %v217 = vsub.s32 4, %v193
  %v218 = vsel %vm133, %v217, %v193
  %v219 = vsel %vm132, %v24, %v216
  %v220 = vsel %vm132, 0, %v218
  %v221 = vcosq.f32.pop %v219
  %v222 = vsinq.f32.pop %v219
  %vm223 = vweird.f32 %v24
  %v224 = vand.u32 %v220, 3
  %vm225 = vcmp.lt.s32.totalorder %v224, 2
  %vm226 = vcmp.eq.s32.totalorder %v224, 0
  %v227 = vxor.u32 %v222, 2147483648
  %v228 = vsel %vm226, %v221, %v227
  %vm229 = vcmp.eq.s32.totalorder %v224, 2
  %v230 = vxor.u32 %v221, 2147483648
  %v231 = vsel %vm229, %v230, %v222
  %v232 = vsel %vm225, %v228, %v231
  %v233 = vsel %vm223, nan, %v232
  %v236 = vunpack.c.l.s4 1983009808
  %v237 = vunpack.c.0.s8 %v236
  %v238 = vlaneseq
  %v239 = vshrl.u32 %v238, 7
  %v240 = vsub.s32 %v237, %v239
  %v241 = vrot.slane %v233, %v240
  %242 = vrot.lane.b32.xlu0 %v241, 16
  %v243 = vpop.permute.xlu0 %242
  %vm245 = vcmask 255104
  %246 = vst.msk [vmem:[%s2] sm:$0x3] %vm245, %v243
  %247 = vset.pattern.permute.xlu0 1
  %248 = vperm.xlu0 %247, %v11
  %v249 = vpop.permute.xlu0 %248
  %v251 = vmul.f32 %v249, %v22
  %v252 = vand.u32 2147483647, %v251
  %vm253 = vcmp.le.f32.partialorder %v252, 0.7853982
  %vm254 = vcmp.lt.s32.totalorder %v251, 0
  %v255 = vand.u32 %v251, 2139095040
  %v256 = vshrl.u32 %v255, 23
  %v257 = vsub.s32 %v256, 127
  %v258 = vand.u32 2147483647, %v251
  %v259 = vand.u32 %v258, 8388607
  %v260 = vor.u32 %v259, 8388608
  %v261 = vsub.s32 0, %v260
  %v262 = vadd.s32 %v257, 1
  %vm263 = vcmp.gt.s32.totalorder %v262, 0
  %v264 = vsel %vm263, %v262, 0
  %v265 = vshrl.u32 %v264, 5
  %v266 = vand.u32 %v264, 31
  %v267 = vsub.s32 32, %v266
  %v268 = vshrl.u32 683565275, %v267
  %v269 = vshll.u32 683565275, %v266
  %v270 = vshrl.u32 2475754826, %v267
  %v271 = vor.u32 %v269, %v270
  %v272 = vshll.u32 2475754826, %v266
  %v273 = vshrl.u32 2131351028, %v267
  %v274 = vor.u32 %v272, %v273
  %v275 = vshll.u32 2131351028, %v266
  %v276 = vshrl.u32 2102212464, %v267
  %v277 = vor.u32 %v275, %v276
  %v278 = vshll.u32 2102212464, %v266
  %v279 = vshrl.u32 920167782, %v267
  %v280 = vor.u32 %v278, %v279
  %v281 = vshll.u32 920167782, %v266
  %v282 = vshrl.u32 1326507024, %v267
  %v283 = vor.u32 %v281, %v282
  %vm284 = vcmp.lt.s32.totalorder %v265, 1
  %vm285 = vcmp.lt.s32.totalorder %v265, 2
  %vm286 = vcmp.lt.s32.totalorder %v265, 3
  %vm287 = vcmp.lt.s32.totalorder %v265, 4
  %v288 = vsel %vm284, %v268, %v271
  %v289 = vsel %vm287, %v277, 2102212464
  %v290 = vsel %vm286, %v274, %v289
  %v291 = vsel %vm285, %v288, %v290
  %v292 = vsel %vm284, %v271, %v274
  %v293 = vsel %vm287, %v280, 920167782
  %v294 = vsel %vm286, %v277, %v293
  %v295 = vsel %vm285, %v292, %v294
  %v296 = vsel %vm284, %v274, %v277
  %v297 = vsel %vm287, %v283, 1326507024
  %v298 = vsel %vm286, %v280, %v297
  %v299 = vsel %vm285, %v296, %v298
  %v300 = vshll.u32 %v260, 8
  %v301 = vmul.u32.u64.compose %v300, %v299
  %v302 = vextract.low.u32 %v301
  %v303 = vextract.high.u32 %v301
  %v304 = vmul.u32.u64.compose %v300, %v295
  %v305 = vextract.low.u32 %v304
  %v306 = vextract.high.u32 %v304
  %v307 = vmul.u32 %v300, %v291
  %v308 = vadd.s32 %v303, %v305
  %vm309 = vc.u32 %v303, %v305
  %v310 = vadd.s32 %v306, 1
  %v311 = vsel %vm309, %v310, %v306
  %v312 = vadd.s32 %v307, %v311
  %v313 = vadd.s32 %v312, 536870912
  %v314 = vshrl.u32 %v313, 30
  %v315 = vshll.u32 %v314, 30
  %v316 = vsub.s32 %v312, %v315
  %vm317 = vcmp.lt.s32.totalorder %v316, 0
  %v318 = vsub.s32 0, %v316
  %v319 = vsel %vm317, %v318, %v316
  %v320 = vclz %v319
  %v321 = vsub.s32 %v320, 2
  %vm322 = vcmp.gt.s32.totalorder 0, %v321
  %v323 = vsel %vm322, 0, %v321
  %v324 = vsub.s32 32, %v323
  %v325 = vshll.u32 %v316, %v323
  %v326 = vshrl.u32 %v308, %v324
  %v327 = vor.u32 %v325, %v326
  %v328 = vsub.s32 4294967266, %v323
  %v329 = vadd.s32 %v328, 127
  %v330 = vshll.u32 %v329, 23
  %v331 = vor.u32 4788187, %v330
  %v332 = vand.u32 2147483647, %v331
  %v334 = vcvt.s32.f32 %v327
  %v335 = vmul.f32 %v334, %v332
  %v336 = vxor.u32 %v335, 2147483648
  %v337 = vsel %vm254, %v336, %v335
  %v338 = vsub.s32 4, %v314
  %v339 = vsel %vm254, %v338, %v314
  %v340 = vsel %vm253, %v251, %v337
  %v341 = vsel %vm253, 0, %v339
  %v342 = vcosq.f32.pop %v340
  %v343 = vsinq.f32.pop %v340
  %vm344 = vweird.f32 %v251
  %v345 = vadd.s32 %v341, 3
  %v346 = vand.u32 %v345, 3
  %vm347 = vcmp.lt.s32.totalorder %v346, 2
  %vm348 = vcmp.eq.s32.totalorder %v346, 0
  %v349 = vxor.u32 %v343, 2147483648
  %v350 = vsel %vm348, %v342, %v349
  %vm351 = vcmp.eq.s32.totalorder %v346, 2
  %v352 = vxor.u32 %v342, 2147483648
  %v353 = vsel %vm351, %v352, %v343
  %v354 = vsel %vm347, %v350, %v353
  %v355 = vsel %vm344, nan, %v354
  %v358 = vunpack.c.l.s4 1983009808
  %v359 = vunpack.c.0.s8 %v358
  %v360 = vlaneseq
  %v361 = vshrl.u32 %v360, 7
  %v362 = vsub.s32 %v359, %v361
  %v363 = vrot.slane %v355, %v362
  %364 = vrot.lane.b32.xlu0 %v363, 32
  %v365 = vpop.permute.xlu0 %364
  %vm367 = vcmask 386304
  %368 = vst.msk [vmem:[%s2] sm:$0x3] %vm367, %v365
  %v369 = vand.u32 2147483647, %v251
  %vm370 = vcmp.le.f32.partialorder %v369, 0.7853982
  %vm371 = vcmp.lt.s32.totalorder %v251, 0
  %v372 = vand.u32 %v251, 2139095040
  %v373 = vshrl.u32 %v372, 23
  %v374 = vsub.s32 %v373, 127
  %v375 = vand.u32 2147483647, %v251
  %v376 = vand.u32 %v375, 8388607
  %v377 = vor.u32 %v376, 8388608
  %v378 = vsub.s32 0, %v377
  %v379 = vadd.s32 %v374, 1
  %vm380 = vcmp.gt.s32.totalorder %v379, 0
  %v381 = vsel %vm380, %v379, 0
  %v382 = vshrl.u32 %v381, 5
  %v383 = vand.u32 %v381, 31
  %v384 = vsub.s32 32, %v383
  %v385 = vshrl.u32 683565275, %v384
  %v386 = vshll.u32 683565275, %v383
  %v387 = vshrl.u32 2475754826, %v384
  %v388 = vor.u32 %v386, %v387
  %v389 = vshll.u32 2475754826, %v383
  %v390 = vshrl.u32 2131351028, %v384
  %v391 = vor.u32 %v389, %v390
  %v392 = vshll.u32 2131351028, %v383
  %v393 = vshrl.u32 2102212464, %v384
  %v394 = vor.u32 %v392, %v393
  %v395 = vshll.u32 2102212464, %v383
  %v396 = vshrl.u32 920167782, %v384
  %v397 = vor.u32 %v395, %v396
  %v398 = vshll.u32 920167782, %v383
  %v399 = vshrl.u32 1326507024, %v384
  %v400 = vor.u32 %v398, %v399
  %vm401 = vcmp.lt.s32.totalorder %v382, 1
  %vm402 = vcmp.lt.s32.totalorder %v382, 2
  %vm403 = vcmp.lt.s32.totalorder %v382, 3
  %vm404 = vcmp.lt.s32.totalorder %v382, 4
  %v405 = vsel %vm401, %v385, %v388
  %v406 = vsel %vm404, %v394, 2102212464
  %v407 = vsel %vm403, %v391, %v406
  %v408 = vsel %vm402, %v405, %v407
  %v409 = vsel %vm401, %v388, %v391
  %v410 = vsel %vm404, %v397, 920167782
  %v411 = vsel %vm403, %v394, %v410
  %v412 = vsel %vm402, %v409, %v411
  %v413 = vsel %vm401, %v391, %v394
  %v414 = vsel %vm404, %v400, 1326507024
  %v415 = vsel %vm403, %v397, %v414
  %v416 = vsel %vm402, %v413, %v415
  %v417 = vshll.u32 %v377, 8
  %v418 = vmul.u32.u64.compose %v417, %v416
  %v419 = vextract.low.u32 %v418
  %v420 = vextract.high.u32 %v418
  %v421 = vmul.u32.u64.compose %v417, %v412
  %v422 = vextract.low.u32 %v421
  %v423 = vextract.high.u32 %v421
  %v424 = vmul.u32 %v417, %v408
  %v425 = vadd.s32 %v420, %v422
  %vm426 = vc.u32 %v420, %v422
  %v427 = vadd.s32 %v423, 1
  %v428 = vsel %vm426, %v427, %v423
  %v429 = vadd.s32 %v424, %v428
  %v430 = vadd.s32 %v429, 536870912
  %v431 = vshrl.u32 %v430, 30
  %v432 = vshll.u32 %v431, 30
  %v433 = vsub.s32 %v429, %v432
  %vm434 = vcmp.lt.s32.totalorder %v433, 0
  %v435 = vsub.s32 0, %v433
  %v436 = vsel %vm434, %v435, %v433
  %v437 = vclz %v436
  %v438 = vsub.s32 %v437, 2
  %vm439 = vcmp.gt.s32.totalorder 0, %v438
  %v440 = vsel %vm439, 0, %v438
  %v441 = vsub.s32 32, %v440
  %v442 = vshll.u32 %v433, %v440
  %v443 = vshrl.u32 %v425, %v441
  %v444 = vor.u32 %v442, %v443
  %v445 = vsub.s32 4294967266, %v440
  %v446 = vadd.s32 %v445, 127
  %v447 = vshll.u32 %v446, 23
  %v448 = vor.u32 4788187, %v447
  %v449 = vand.u32 2147483647, %v448
  %v451 = vcvt.s32.f32 %v444
  %v452 = vmul.f32 %v451, %v449
  %v453 = vxor.u32 %v452, 2147483648
  %v454 = vsel %vm371, %v453, %v452
  %v455 = vsub.s32 4, %v431
  %v456 = vsel %vm371, %v455, %v431
  %v457 = vsel %vm370, %v251, %v454
  %v458 = vsel %vm370, 0, %v456
  %v459 = vcosq.f32.pop %v457
  %v460 = vsinq.f32.pop %v457
  %vm461 = vweird.f32 %v251
  %v462 = vand.u32 %v458, 3
  %vm463 = vcmp.lt.s32.totalorder %v462, 2
  %vm464 = vcmp.eq.s32.totalorder %v462, 0
  %v465 = vxor.u32 %v460, 2147483648
  %v466 = vsel %vm464, %v459, %v465
  %vm467 = vcmp.eq.s32.totalorder %v462, 2
  %v468 = vxor.u32 %v459, 2147483648
  %v469 = vsel %vm467, %v468, %v460
  %v470 = vsel %vm463, %v466, %v469
  %v471 = vsel %vm461, nan, %v470
  %v474 = vunpack.c.l.s4 1983009808
  %v475 = vunpack.c.0.s8 %v474
  %v476 = vlaneseq
  %v477 = vshrl.u32 %v476, 7
  %v478 = vsub.s32 %v475, %v477
  %v479 = vrot.slane %v471, %v478
  %480 = vrot.lane.b32.xlu0 %v479, 48
  %v481 = vpop.permute.xlu0 %480
  %vm483 = vcmask 517504
  %484 = vst.msk [vmem:[%s2] sm:$0x3] %vm483, %v481
  %485 = vset.pattern.permute.xlu0 2
  %486 = vperm.xlu0 %485, %v11
  %v487 = vpop.permute.xlu0 %486
  %v489 = vmul.f32 %v487, %v22
  %v490 = vand.u32 2147483647, %v489
  %vm491 = vcmp.le.f32.partialorder %v490, 0.7853982
  %vm492 = vcmp.lt.s32.totalorder %v489, 0
  %v493 = vand.u32 %v489, 2139095040
  %v494 = vshrl.u32 %v493, 23
  %v495 = vsub.s32 %v494, 127
  %v496 = vand.u32 2147483647, %v489
  %v497 = vand.u32 %v496, 8388607
  %v498 = vor.u32 %v497, 8388608
  %v499 = vsub.s32 0, %v498
  %v500 = vadd.s32 %v495, 1
  %vm501 = vcmp.gt.s32.totalorder %v500, 0
  %v502 = vsel %vm501, %v500, 0
  %v503 = vshrl.u32 %v502, 5
  %v504 = vand.u32 %v502, 31
  %v505 = vsub.s32 32, %v504
  %v506 = vshrl.u32 683565275, %v505
  %v507 = vshll.u32 683565275, %v504
  %v508 = vshrl.u32 2475754826, %v505
  %v509 = vor.u32 %v507, %v508
  %v510 = vshll.u32 2475754826, %v504
  %v511 = vshrl.u32 2131351028, %v505
  %v512 = vor.u32 %v510, %v511
  %v513 = vshll.u32 2131351028, %v504
  %v514 = vshrl.u32 2102212464, %v505
  %v515 = vor.u32 %v513, %v514
  %v516 = vshll.u32 2102212464, %v504
  %v517 = vshrl.u32 920167782, %v505
  %v518 = vor.u32 %v516, %v517
  %v519 = vshll.u32 920167782, %v504
  %v520 = vshrl.u32 1326507024, %v505
  %v521 = vor.u32 %v519, %v520
  %vm522 = vcmp.lt.s32.totalorder %v503, 1
  %vm523 = vcmp.lt.s32.totalorder %v503, 2
  %vm524 = vcmp.lt.s32.totalorder %v503, 3
  %vm525 = vcmp.lt.s32.totalorder %v503, 4
  %v526 = vsel %vm522, %v506, %v509
  %v527 = vsel %vm525, %v515, 2102212464
  %v528 = vsel %vm524, %v512, %v527
  %v529 = vsel %vm523, %v526, %v528
  %v530 = vsel %vm522, %v509, %v512
  %v531 = vsel %vm525, %v518, 920167782
  %v532 = vsel %vm524, %v515, %v531
  %v533 = vsel %vm523, %v530, %v532
  %v534 = vsel %vm522, %v512, %v515
  %v535 = vsel %vm525, %v521, 1326507024
  %v536 = vsel %vm524, %v518, %v535
  %v537 = vsel %vm523, %v534, %v536
  %v538 = vshll.u32 %v498, 8
  %v539 = vmul.u32.u64.compose %v538, %v537
  %v540 = vextract.low.u32 %v539
  %v541 = vextract.high.u32 %v539
  %v542 = vmul.u32.u64.compose %v538, %v533
  %v543 = vextract.low.u32 %v542
  %v544 = vextract.high.u32 %v542
  %v545 = vmul.u32 %v538, %v529
  %v546 = vadd.s32 %v541, %v543
  %vm547 = vc.u32 %v541, %v543
  %v548 = vadd.s32 %v544, 1
  %v549 = vsel %vm547, %v548, %v544
  %v550 = vadd.s32 %v545, %v549
  %v551 = vadd.s32 %v550, 536870912
  %v552 = vshrl.u32 %v551, 30
  %v553 = vshll.u32 %v552, 30
  %v554 = vsub.s32 %v550, %v553
  %vm555 = vcmp.lt.s32.totalorder %v554, 0
  %v556 = vsub.s32 0, %v554
  %v557 = vsel %vm555, %v556, %v554
  %v558 = vclz %v557
  %v559 = vsub.s32 %v558, 2
  %vm560 = vcmp.gt.s32.totalorder 0, %v559
  %v561 = vsel %vm560, 0, %v559
  %v562 = vsub.s32 32, %v561
  %v563 = vshll.u32 %v554, %v561
  %v564 = vshrl.u32 %v546, %v562
  %v565 = vor.u32 %v563, %v564
  %v566 = vsub.s32 4294967266, %v561
  %v567 = vadd.s32 %v566, 127
  %v568 = vshll.u32 %v567, 23
  %v569 = vor.u32 4788187, %v568
  %v570 = vand.u32 2147483647, %v569
  %v572 = vcvt.s32.f32 %v565
  %v573 = vmul.f32 %v572, %v570
  %v574 = vxor.u32 %v573, 2147483648
  %v575 = vsel %vm492, %v574, %v573
  %v576 = vsub.s32 4, %v552
  %v577 = vsel %vm492, %v576, %v552
  %v578 = vsel %vm491, %v489, %v575
  %v579 = vsel %vm491, 0, %v577
  %v580 = vcosq.f32.pop %v578
  %v581 = vsinq.f32.pop %v578
  %vm582 = vweird.f32 %v489
  %v583 = vadd.s32 %v579, 3
  %v584 = vand.u32 %v583, 3
  %vm585 = vcmp.lt.s32.totalorder %v584, 2
  %vm586 = vcmp.eq.s32.totalorder %v584, 0
  %v587 = vxor.u32 %v581, 2147483648
  %v588 = vsel %vm586, %v580, %v587
  %vm589 = vcmp.eq.s32.totalorder %v584, 2
  %v590 = vxor.u32 %v580, 2147483648
  %v591 = vsel %vm589, %v590, %v581
  %v592 = vsel %vm585, %v588, %v591
  %v593 = vsel %vm582, nan, %v592
  %v596 = vunpack.c.l.s4 1983009808
  %v597 = vunpack.c.0.s8 %v596
  %v598 = vlaneseq
  %v599 = vshrl.u32 %v598, 7
  %v600 = vsub.s32 %v597, %v599
  %v601 = vrot.slane %v593, %v600
  %602 = vrot.lane.b32.xlu0 %v601, 64
  %v603 = vpop.permute.xlu0 %602
  %vm605 = vcmask 648704
  %606 = vst.msk [vmem:[%s2] sm:$0x3] %vm605, %v603
  %v607 = vand.u32 2147483647, %v489
  %vm608 = vcmp.le.f32.partialorder %v607, 0.7853982
  %vm609 = vcmp.lt.s32.totalorder %v489, 0
  %v610 = vand.u32 %v489, 2139095040
  %v611 = vshrl.u32 %v610, 23
  %v612 = vsub.s32 %v611, 127
  %v613 = vand.u32 2147483647, %v489
  %v614 = vand.u32 %v613, 8388607
  %v615 = vor.u32 %v614, 8388608
  %v616 = vsub.s32 0, %v615
  %v617 = vadd.s32 %v612, 1
  %vm618 = vcmp.gt.s32.totalorder %v617, 0
  %v619 = vsel %vm618, %v617, 0
  %v620 = vshrl.u32 %v619, 5
  %v621 = vand.u32 %v619, 31
  %v622 = vsub.s32 32, %v621
  %v623 = vshrl.u32 683565275, %v622
  %v624 = vshll.u32 683565275, %v621
  %v625 = vshrl.u32 2475754826, %v622
  %v626 = vor.u32 %v624, %v625
  %v627 = vshll.u32 2475754826, %v621
  %v628 = vshrl.u32 2131351028, %v622
  %v629 = vor.u32 %v627, %v628
  %v630 = vshll.u32 2131351028, %v621
  %v631 = vshrl.u32 2102212464, %v622
  %v632 = vor.u32 %v630, %v631
  %v633 = vshll.u32 2102212464, %v621
  %v634 = vshrl.u32 920167782, %v622
  %v635 = vor.u32 %v633, %v634
  %v636 = vshll.u32 920167782, %v621
  %v637 = vshrl.u32 1326507024, %v622
  %v638 = vor.u32 %v636, %v637
  %vm639 = vcmp.lt.s32.totalorder %v620, 1
  %vm640 = vcmp.lt.s32.totalorder %v620, 2
  %vm641 = vcmp.lt.s32.totalorder %v620, 3
  %vm642 = vcmp.lt.s32.totalorder %v620, 4
  %v643 = vsel %vm639, %v623, %v626
  %v644 = vsel %vm642, %v632, 2102212464
  %v645 = vsel %vm641, %v629, %v644
  %v646 = vsel %vm640, %v643, %v645
  %v647 = vsel %vm639, %v626, %v629
  %v648 = vsel %vm642, %v635, 920167782
  %v649 = vsel %vm641, %v632, %v648
  %v650 = vsel %vm640, %v647, %v649
  %v651 = vsel %vm639, %v629, %v632
  %v652 = vsel %vm642, %v638, 1326507024
  %v653 = vsel %vm641, %v635, %v652
  %v654 = vsel %vm640, %v651, %v653
  %v655 = vshll.u32 %v615, 8
  %v656 = vmul.u32.u64.compose %v655, %v654
  %v657 = vextract.low.u32 %v656
  %v658 = vextract.high.u32 %v656
  %v659 = vmul.u32.u64.compose %v655, %v650
  %v660 = vextract.low.u32 %v659
  %v661 = vextract.high.u32 %v659
  %v662 = vmul.u32 %v655, %v646
  %v663 = vadd.s32 %v658, %v660
  %vm664 = vc.u32 %v658, %v660
  %v665 = vadd.s32 %v661, 1
  %v666 = vsel %vm664, %v665, %v661
  %v667 = vadd.s32 %v662, %v666
  %v668 = vadd.s32 %v667, 536870912
  %v669 = vshrl.u32 %v668, 30
  %v670 = vshll.u32 %v669, 30
  %v671 = vsub.s32 %v667, %v670
  %vm672 = vcmp.lt.s32.totalorder %v671, 0
  %v673 = vsub.s32 0, %v671
  %v674 = vsel %vm672, %v673, %v671
  %v675 = vclz %v674
  %v676 = vsub.s32 %v675, 2
  %vm677 = vcmp.gt.s32.totalorder 0, %v676
  %v678 = vsel %vm677, 0, %v676
  %v679 = vsub.s32 32, %v678
  %v680 = vshll.u32 %v671, %v678
  %v681 = vshrl.u32 %v663, %v679
  %v682 = vor.u32 %v680, %v681
  %v683 = vsub.s32 4294967266, %v678
  %v684 = vadd.s32 %v683, 127
  %v685 = vshll.u32 %v684, 23
  %v686 = vor.u32 4788187, %v685
  %v687 = vand.u32 2147483647, %v686
  %v689 = vcvt.s32.f32 %v682
  %v690 = vmul.f32 %v689, %v687
  %v691 = vxor.u32 %v690, 2147483648
  %v692 = vsel %vm609, %v691, %v690
  %v693 = vsub.s32 4, %v669
  %v694 = vsel %vm609, %v693, %v669
  %v695 = vsel %vm608, %v489, %v692
  %v696 = vsel %vm608, 0, %v694
  %v697 = vcosq.f32.pop %v695
  %v698 = vsinq.f32.pop %v695
  %vm699 = vweird.f32 %v489
  %v700 = vand.u32 %v696, 3
  %vm701 = vcmp.lt.s32.totalorder %v700, 2
  %vm702 = vcmp.eq.s32.totalorder %v700, 0
  %v703 = vxor.u32 %v698, 2147483648
  %v704 = vsel %vm702, %v697, %v703
  %vm705 = vcmp.eq.s32.totalorder %v700, 2
  %v706 = vxor.u32 %v697, 2147483648
  %v707 = vsel %vm705, %v706, %v698
  %v708 = vsel %vm701, %v704, %v707
  %v709 = vsel %vm699, nan, %v708
  %v712 = vunpack.c.l.s4 1983009808
  %v713 = vunpack.c.0.s8 %v712
  %v714 = vlaneseq
  %v715 = vshrl.u32 %v714, 7
  %v716 = vsub.s32 %v713, %v715
  %v717 = vrot.slane %v709, %v716
  %718 = vrot.lane.b32.xlu0 %v717, 80
  %v719 = vpop.permute.xlu0 %718
  %vm721 = vcmask 779904
  %722 = vst.msk [vmem:[%s2] sm:$0x3] %vm721, %v719
  %723 = vset.pattern.permute.xlu0 3
  %724 = vperm.xlu0 %723, %v11
  %v725 = vpop.permute.xlu0 %724
  %v727 = vmul.f32 %v725, %v22
  %v728 = vand.u32 2147483647, %v727
  %vm729 = vcmp.le.f32.partialorder %v728, 0.7853982
  %vm730 = vcmp.lt.s32.totalorder %v727, 0
  %v731 = vand.u32 %v727, 2139095040
  %v732 = vshrl.u32 %v731, 23
  %v733 = vsub.s32 %v732, 127
  %v734 = vand.u32 2147483647, %v727
  %v735 = vand.u32 %v734, 8388607
  %v736 = vor.u32 %v735, 8388608
  %v737 = vsub.s32 0, %v736
  %v738 = vadd.s32 %v733, 1
  %vm739 = vcmp.gt.s32.totalorder %v738, 0
  %v740 = vsel %vm739, %v738, 0
  %v741 = vshrl.u32 %v740, 5
  %v742 = vand.u32 %v740, 31
  %v743 = vsub.s32 32, %v742
  %v744 = vshrl.u32 683565275, %v743
  %v745 = vshll.u32 683565275, %v742
  %v746 = vshrl.u32 2475754826, %v743
  %v747 = vor.u32 %v745, %v746
  %v748 = vshll.u32 2475754826, %v742
  %v749 = vshrl.u32 2131351028, %v743
  %v750 = vor.u32 %v748, %v749
  %v751 = vshll.u32 2131351028, %v742
  %v752 = vshrl.u32 2102212464, %v743
  %v753 = vor.u32 %v751, %v752
  %v754 = vshll.u32 2102212464, %v742
  %v755 = vshrl.u32 920167782, %v743
  %v756 = vor.u32 %v754, %v755
  %v757 = vshll.u32 920167782, %v742
  %v758 = vshrl.u32 1326507024, %v743
  %v759 = vor.u32 %v757, %v758
  %vm760 = vcmp.lt.s32.totalorder %v741, 1
  %vm761 = vcmp.lt.s32.totalorder %v741, 2
  %vm762 = vcmp.lt.s32.totalorder %v741, 3
  %vm763 = vcmp.lt.s32.totalorder %v741, 4
  %v764 = vsel %vm760, %v744, %v747
  %v765 = vsel %vm763, %v753, 2102212464
  %v766 = vsel %vm762, %v750, %v765
  %v767 = vsel %vm761, %v764, %v766
  %v768 = vsel %vm760, %v747, %v750
  %v769 = vsel %vm763, %v756, 920167782
  %v770 = vsel %vm762, %v753, %v769
  %v771 = vsel %vm761, %v768, %v770
  %v772 = vsel %vm760, %v750, %v753
  %v773 = vsel %vm763, %v759, 1326507024
  %v774 = vsel %vm762, %v756, %v773
  %v775 = vsel %vm761, %v772, %v774
  %v776 = vshll.u32 %v736, 8
  %v777 = vmul.u32.u64.compose %v776, %v775
  %v778 = vextract.low.u32 %v777
  %v779 = vextract.high.u32 %v777
  %v780 = vmul.u32.u64.compose %v776, %v771
  %v781 = vextract.low.u32 %v780
  %v782 = vextract.high.u32 %v780
  %v783 = vmul.u32 %v776, %v767
  %v784 = vadd.s32 %v779, %v781
  %vm785 = vc.u32 %v779, %v781
  %v786 = vadd.s32 %v782, 1
  %v787 = vsel %vm785, %v786, %v782
  %v788 = vadd.s32 %v783, %v787
  %v789 = vadd.s32 %v788, 536870912
  %v790 = vshrl.u32 %v789, 30
  %v791 = vshll.u32 %v790, 30
  %v792 = vsub.s32 %v788, %v791
  %vm793 = vcmp.lt.s32.totalorder %v792, 0
  %v794 = vsub.s32 0, %v792
  %v795 = vsel %vm793, %v794, %v792
  %v796 = vclz %v795
  %v797 = vsub.s32 %v796, 2
  %vm798 = vcmp.gt.s32.totalorder 0, %v797
  %v799 = vsel %vm798, 0, %v797
  %v800 = vsub.s32 32, %v799
  %v801 = vshll.u32 %v792, %v799
  %v802 = vshrl.u32 %v784, %v800
  %v803 = vor.u32 %v801, %v802
  %v804 = vsub.s32 4294967266, %v799
  %v805 = vadd.s32 %v804, 127
  %v806 = vshll.u32 %v805, 23
  %v807 = vor.u32 4788187, %v806
  %v808 = vand.u32 2147483647, %v807
  %v810 = vcvt.s32.f32 %v803
  %v811 = vmul.f32 %v810, %v808
  %v812 = vxor.u32 %v811, 2147483648
  %v813 = vsel %vm730, %v812, %v811
  %v814 = vsub.s32 4, %v790
  %v815 = vsel %vm730, %v814, %v790
  %v816 = vsel %vm729, %v727, %v813
  %v817 = vsel %vm729, 0, %v815
  %v818 = vcosq.f32.pop %v816
  %v819 = vsinq.f32.pop %v816
  %vm820 = vweird.f32 %v727
  %v821 = vadd.s32 %v817, 3
  %v822 = vand.u32 %v821, 3
  %vm823 = vcmp.lt.s32.totalorder %v822, 2
  %vm824 = vcmp.eq.s32.totalorder %v822, 0
  %v825 = vxor.u32 %v819, 2147483648
  %v826 = vsel %vm824, %v818, %v825
  %vm827 = vcmp.eq.s32.totalorder %v822, 2
  %v828 = vxor.u32 %v818, 2147483648
  %v829 = vsel %vm827, %v828, %v819
  %v830 = vsel %vm823, %v826, %v829
  %v831 = vsel %vm820, nan, %v830
  %v834 = vunpack.c.l.s4 1983009808
  %v835 = vunpack.c.0.s8 %v834
  %v836 = vlaneseq
  %v837 = vshrl.u32 %v836, 7
  %v838 = vsub.s32 %v835, %v837
  %v839 = vrot.slane %v831, %v838
  %840 = vrot.lane.b32.xlu0 %v839, 96
  %v841 = vpop.permute.xlu0 %840
  %vm843 = vcmask 911104
  %844 = vst.msk [vmem:[%s2] sm:$0x3] %vm843, %v841
  %v845 = vand.u32 2147483647, %v727
  %vm846 = vcmp.le.f32.partialorder %v845, 0.7853982
  %vm847 = vcmp.lt.s32.totalorder %v727, 0
  %v848 = vand.u32 %v727, 2139095040
  %v849 = vshrl.u32 %v848, 23
  %v850 = vsub.s32 %v849, 127
  %v851 = vand.u32 2147483647, %v727
  %v852 = vand.u32 %v851, 8388607
  %v853 = vor.u32 %v852, 8388608
  %v854 = vsub.s32 0, %v853
  %v855 = vadd.s32 %v850, 1
  %vm856 = vcmp.gt.s32.totalorder %v855, 0
  %v857 = vsel %vm856, %v855, 0
  %v858 = vshrl.u32 %v857, 5
  %v859 = vand.u32 %v857, 31
  %v860 = vsub.s32 32, %v859
  %v861 = vshrl.u32 683565275, %v860
  %v862 = vshll.u32 683565275, %v859
  %v863 = vshrl.u32 2475754826, %v860
  %v864 = vor.u32 %v862, %v863
  %v865 = vshll.u32 2475754826, %v859
  %v866 = vshrl.u32 2131351028, %v860
  %v867 = vor.u32 %v865, %v866
  %v868 = vshll.u32 2131351028, %v859
  %v869 = vshrl.u32 2102212464, %v860
  %v870 = vor.u32 %v868, %v869
  %v871 = vshll.u32 2102212464, %v859
  %v872 = vshrl.u32 920167782, %v860
  %v873 = vor.u32 %v871, %v872
  %v874 = vshll.u32 920167782, %v859
  %v875 = vshrl.u32 1326507024, %v860
  %v876 = vor.u32 %v874, %v875
  %vm877 = vcmp.lt.s32.totalorder %v858, 1
  %vm878 = vcmp.lt.s32.totalorder %v858, 2
  %vm879 = vcmp.lt.s32.totalorder %v858, 3
  %vm880 = vcmp.lt.s32.totalorder %v858, 4
  %v881 = vsel %vm877, %v861, %v864
  %v882 = vsel %vm880, %v870, 2102212464
  %v883 = vsel %vm879, %v867, %v882
  %v884 = vsel %vm878, %v881, %v883
  %v885 = vsel %vm877, %v864, %v867
  %v886 = vsel %vm880, %v873, 920167782
  %v887 = vsel %vm879, %v870, %v886
  %v888 = vsel %vm878, %v885, %v887
  %v889 = vsel %vm877, %v867, %v870
  %v890 = vsel %vm880, %v876, 1326507024
  %v891 = vsel %vm879, %v873, %v890
  %v892 = vsel %vm878, %v889, %v891
  %v893 = vshll.u32 %v853, 8
  %v894 = vmul.u32.u64.compose %v893, %v892
  %v895 = vextract.low.u32 %v894
  %v896 = vextract.high.u32 %v894
  %v897 = vmul.u32.u64.compose %v893, %v888
  %v898 = vextract.low.u32 %v897
  %v899 = vextract.high.u32 %v897
  %v900 = vmul.u32 %v893, %v884
  %v901 = vadd.s32 %v896, %v898
  %vm902 = vc.u32 %v896, %v898
  %v903 = vadd.s32 %v899, 1
  %v904 = vsel %vm902, %v903, %v899
  %v905 = vadd.s32 %v900, %v904
  %v906 = vadd.s32 %v905, 536870912
  %v907 = vshrl.u32 %v906, 30
  %v908 = vshll.u32 %v907, 30
  %v909 = vsub.s32 %v905, %v908
  %vm910 = vcmp.lt.s32.totalorder %v909, 0
  %v911 = vsub.s32 0, %v909
  %v912 = vsel %vm910, %v911, %v909
  %v913 = vclz %v912
  %v914 = vsub.s32 %v913, 2
  %vm915 = vcmp.gt.s32.totalorder 0, %v914
  %v916 = vsel %vm915, 0, %v914
  %v917 = vsub.s32 32, %v916
  %v918 = vshll.u32 %v909, %v916
  %v919 = vshrl.u32 %v901, %v917
  %v920 = vor.u32 %v918, %v919
  %v921 = vsub.s32 4294967266, %v916
  %v922 = vadd.s32 %v921, 127
  %v923 = vshll.u32 %v922, 23
  %v924 = vor.u32 4788187, %v923
  %v925 = vand.u32 2147483647, %v924
  %v927 = vcvt.s32.f32 %v920
  %v928 = vmul.f32 %v927, %v925
  %v929 = vxor.u32 %v928, 2147483648
  %v930 = vsel %vm847, %v929, %v928
  %v931 = vsub.s32 4, %v907
  %v932 = vsel %vm847, %v931, %v907
  %v933 = vsel %vm846, %v727, %v930
  %v934 = vsel %vm846, 0, %v932
  %v935 = vcosq.f32.pop %v933
  %v936 = vsinq.f32.pop %v933
  %vm937 = vweird.f32 %v727
  %v938 = vand.u32 %v934, 3
  %vm939 = vcmp.lt.s32.totalorder %v938, 2
  %vm940 = vcmp.eq.s32.totalorder %v938, 0
  %v941 = vxor.u32 %v936, 2147483648
  %v942 = vsel %vm940, %v935, %v941
  %vm943 = vcmp.eq.s32.totalorder %v938, 2
  %v944 = vxor.u32 %v935, 2147483648
  %v945 = vsel %vm943, %v944, %v936
  %v946 = vsel %vm939, %v942, %v945
  %v947 = vsel %vm937, nan, %v946
  %v950 = vunpack.c.l.s4 1983009808
  %v951 = vunpack.c.0.s8 %v950
  %v952 = vlaneseq
  %v953 = vshrl.u32 %v952, 7
  %v954 = vsub.s32 %v951, %v953
  %v955 = vrot.slane %v947, %v954
  %956 = vrot.lane.b32.xlu0 %v955, 112
  %v957 = vpop.permute.xlu0 %956
  %vm959 = vcmask 1042304
  %960 = vst.msk [vmem:[%s2] sm:$0x3] %vm959, %v957
  %961 = vset.pattern.permute.xlu0 4
  %962 = vperm.xlu0 %961, %v11
  %v963 = vpop.permute.xlu0 %962
  %v965 = vmul.f32 %v963, %v22
  %v966 = vand.u32 2147483647, %v965
  %vm967 = vcmp.le.f32.partialorder %v966, 0.7853982
  %vm968 = vcmp.lt.s32.totalorder %v965, 0
  %v969 = vand.u32 %v965, 2139095040
  %v970 = vshrl.u32 %v969, 23
  %v971 = vsub.s32 %v970, 127
  %v972 = vand.u32 2147483647, %v965
  %v973 = vand.u32 %v972, 8388607
  %v974 = vor.u32 %v973, 8388608
  %v975 = vsub.s32 0, %v974
  %v976 = vadd.s32 %v971, 1
  %vm977 = vcmp.gt.s32.totalorder %v976, 0
  %v978 = vsel %vm977, %v976, 0
  %v979 = vshrl.u32 %v978, 5
  %v980 = vand.u32 %v978, 31
  %v981 = vsub.s32 32, %v980
  %v982 = vshrl.u32 683565275, %v981
  %v983 = vshll.u32 683565275, %v980
  %v984 = vshrl.u32 2475754826, %v981
  %v985 = vor.u32 %v983, %v984
  %v986 = vshll.u32 2475754826, %v980
  %v987 = vshrl.u32 2131351028, %v981
  %v988 = vor.u32 %v986, %v987
  %v989 = vshll.u32 2131351028, %v980
  %v990 = vshrl.u32 2102212464, %v981
  %v991 = vor.u32 %v989, %v990
  %v992 = vshll.u32 2102212464, %v980
  %v993 = vshrl.u32 920167782, %v981
  %v994 = vor.u32 %v992, %v993
  %v995 = vshll.u32 920167782, %v980
  %v996 = vshrl.u32 1326507024, %v981
  %v997 = vor.u32 %v995, %v996
  %vm998 = vcmp.lt.s32.totalorder %v979, 1
  %vm999 = vcmp.lt.s32.totalorder %v979, 2
  %vm1000 = vcmp.lt.s32.totalorder %v979, 3
  %vm1001 = vcmp.lt.s32.totalorder %v979, 4
  %v1002 = vsel %vm998, %v982, %v985
  %v1003 = vsel %vm1001, %v991, 2102212464
  %v1004 = vsel %vm1000, %v988, %v1003
  %v1005 = vsel %vm999, %v1002, %v1004
  %v1006 = vsel %vm998, %v985, %v988
  %v1007 = vsel %vm1001, %v994, 920167782
  %v1008 = vsel %vm1000, %v991, %v1007
  %v1009 = vsel %vm999, %v1006, %v1008
  %v1010 = vsel %vm998, %v988, %v991
  %v1011 = vsel %vm1001, %v997, 1326507024
  %v1012 = vsel %vm1000, %v994, %v1011
  %v1013 = vsel %vm999, %v1010, %v1012
  %v1014 = vshll.u32 %v974, 8
  %v1015 = vmul.u32.u64.compose %v1014, %v1013
  %v1016 = vextract.low.u32 %v1015
  %v1017 = vextract.high.u32 %v1015
  %v1018 = vmul.u32.u64.compose %v1014, %v1009
  %v1019 = vextract.low.u32 %v1018
  %v1020 = vextract.high.u32 %v1018
  %v1021 = vmul.u32 %v1014, %v1005
  %v1022 = vadd.s32 %v1017, %v1019
  %vm1023 = vc.u32 %v1017, %v1019
  %v1024 = vadd.s32 %v1020, 1
  %v1025 = vsel %vm1023, %v1024, %v1020
  %v1026 = vadd.s32 %v1021, %v1025
  %v1027 = vadd.s32 %v1026, 536870912
  %v1028 = vshrl.u32 %v1027, 30
  %v1029 = vshll.u32 %v1028, 30
  %v1030 = vsub.s32 %v1026, %v1029
  %vm1031 = vcmp.lt.s32.totalorder %v1030, 0
  %v1032 = vsub.s32 0, %v1030
  %v1033 = vsel %vm1031, %v1032, %v1030
  %v1034 = vclz %v1033
  %v1035 = vsub.s32 %v1034, 2
  %vm1036 = vcmp.gt.s32.totalorder 0, %v1035
  %v1037 = vsel %vm1036, 0, %v1035
  %v1038 = vsub.s32 32, %v1037
  %v1039 = vshll.u32 %v1030, %v1037
  %v1040 = vshrl.u32 %v1022, %v1038
  %v1041 = vor.u32 %v1039, %v1040
  %v1042 = vsub.s32 4294967266, %v1037
  %v1043 = vadd.s32 %v1042, 127
  %v1044 = vshll.u32 %v1043, 23
  %v1045 = vor.u32 4788187, %v1044
  %v1046 = vand.u32 2147483647, %v1045
  %v1048 = vcvt.s32.f32 %v1041
  %v1049 = vmul.f32 %v1048, %v1046
  %v1050 = vxor.u32 %v1049, 2147483648
  %v1051 = vsel %vm968, %v1050, %v1049
  %v1052 = vsub.s32 4, %v1028
  %v1053 = vsel %vm968, %v1052, %v1028
  %v1054 = vsel %vm967, %v965, %v1051
  %v1055 = vsel %vm967, 0, %v1053
  %v1056 = vcosq.f32.pop %v1054
  %v1057 = vsinq.f32.pop %v1054
  %vm1058 = vweird.f32 %v965
  %v1059 = vadd.s32 %v1055, 3
  %v1060 = vand.u32 %v1059, 3
  %vm1061 = vcmp.lt.s32.totalorder %v1060, 2
  %vm1062 = vcmp.eq.s32.totalorder %v1060, 0
  %v1063 = vxor.u32 %v1057, 2147483648
  %v1064 = vsel %vm1062, %v1056, %v1063
  %vm1065 = vcmp.eq.s32.totalorder %v1060, 2
  %v1066 = vxor.u32 %v1056, 2147483648
  %v1067 = vsel %vm1065, %v1066, %v1057
  %v1068 = vsel %vm1061, %v1064, %v1067
  %v1069 = vsel %vm1058, nan, %v1068
  %1070 = vst.msk [vmem:[%s2 + $0x2] sm:$0x3] %vm129, %v1069
  %v1071 = vand.u32 2147483647, %v965
  %vm1072 = vcmp.le.f32.partialorder %v1071, 0.7853982
  %vm1073 = vcmp.lt.s32.totalorder %v965, 0
  %v1074 = vand.u32 %v965, 2139095040
  %v1075 = vshrl.u32 %v1074, 23
  %v1076 = vsub.s32 %v1075, 127
  %v1077 = vand.u32 2147483647, %v965
  %v1078 = vand.u32 %v1077, 8388607
  %v1079 = vor.u32 %v1078, 8388608
  %v1080 = vsub.s32 0, %v1079
  %v1081 = vadd.s32 %v1076, 1
  %vm1082 = vcmp.gt.s32.totalorder %v1081, 0
  %v1083 = vsel %vm1082, %v1081, 0
  %v1084 = vshrl.u32 %v1083, 5
  %v1085 = vand.u32 %v1083, 31
  %v1086 = vsub.s32 32, %v1085
  %v1087 = vshrl.u32 683565275, %v1086
  %v1088 = vshll.u32 683565275, %v1085
  %v1089 = vshrl.u32 2475754826, %v1086
  %v1090 = vor.u32 %v1088, %v1089
  %v1091 = vshll.u32 2475754826, %v1085
  %v1092 = vshrl.u32 2131351028, %v1086
  %v1093 = vor.u32 %v1091, %v1092
  %v1094 = vshll.u32 2131351028, %v1085
  %v1095 = vshrl.u32 2102212464, %v1086
  %v1096 = vor.u32 %v1094, %v1095
  %v1097 = vshll.u32 2102212464, %v1085
  %v1098 = vshrl.u32 920167782, %v1086
  %v1099 = vor.u32 %v1097, %v1098
  %v1100 = vshll.u32 920167782, %v1085
  %v1101 = vshrl.u32 1326507024, %v1086
  %v1102 = vor.u32 %v1100, %v1101
  %vm1103 = vcmp.lt.s32.totalorder %v1084, 1
  %vm1104 = vcmp.lt.s32.totalorder %v1084, 2
  %vm1105 = vcmp.lt.s32.totalorder %v1084, 3
  %vm1106 = vcmp.lt.s32.totalorder %v1084, 4
  %v1107 = vsel %vm1103, %v1087, %v1090
  %v1108 = vsel %vm1106, %v1096, 2102212464
  %v1109 = vsel %vm1105, %v1093, %v1108
  %v1110 = vsel %vm1104, %v1107, %v1109
  %v1111 = vsel %vm1103, %v1090, %v1093
  %v1112 = vsel %vm1106, %v1099, 920167782
  %v1113 = vsel %vm1105, %v1096, %v1112
  %v1114 = vsel %vm1104, %v1111, %v1113
  %v1115 = vsel %vm1103, %v1093, %v1096
  %v1116 = vsel %vm1106, %v1102, 1326507024
  %v1117 = vsel %vm1105, %v1099, %v1116
  %v1118 = vsel %vm1104, %v1115, %v1117
  %v1119 = vshll.u32 %v1079, 8
  %v1120 = vmul.u32.u64.compose %v1119, %v1118
  %v1121 = vextract.low.u32 %v1120
  %v1122 = vextract.high.u32 %v1120
  %v1123 = vmul.u32.u64.compose %v1119, %v1114
  %v1124 = vextract.low.u32 %v1123
  %v1125 = vextract.high.u32 %v1123
  %v1126 = vmul.u32 %v1119, %v1110
  %v1127 = vadd.s32 %v1122, %v1124
  %vm1128 = vc.u32 %v1122, %v1124
  %v1129 = vadd.s32 %v1125, 1
  %v1130 = vsel %vm1128, %v1129, %v1125
  %v1131 = vadd.s32 %v1126, %v1130
  %v1132 = vadd.s32 %v1131, 536870912
  %v1133 = vshrl.u32 %v1132, 30
  %v1134 = vshll.u32 %v1133, 30
  %v1135 = vsub.s32 %v1131, %v1134
  %vm1136 = vcmp.lt.s32.totalorder %v1135, 0
  %v1137 = vsub.s32 0, %v1135
  %v1138 = vsel %vm1136, %v1137, %v1135
  %v1139 = vclz %v1138
  %v1140 = vsub.s32 %v1139, 2
  %vm1141 = vcmp.gt.s32.totalorder 0, %v1140
  %v1142 = vsel %vm1141, 0, %v1140
  %v1143 = vsub.s32 32, %v1142
  %v1144 = vshll.u32 %v1135, %v1142
  %v1145 = vshrl.u32 %v1127, %v1143
  %v1146 = vor.u32 %v1144, %v1145
  %v1147 = vsub.s32 4294967266, %v1142
  %v1148 = vadd.s32 %v1147, 127
  %v1149 = vshll.u32 %v1148, 23
  %v1150 = vor.u32 4788187, %v1149
  %v1151 = vand.u32 2147483647, %v1150
  %v1153 = vcvt.s32.f32 %v1146
  %v1154 = vmul.f32 %v1153, %v1151
  %v1155 = vxor.u32 %v1154, 2147483648
  %v1156 = vsel %vm1073, %v1155, %v1154
  %v1157 = vsub.s32 4, %v1133
  %v1158 = vsel %vm1073, %v1157, %v1133
  %v1159 = vsel %vm1072, %v965, %v1156
  %v1160 = vsel %vm1072, 0, %v1158
  %v1161 = vcosq.f32.pop %v1159
  %v1162 = vsinq.f32.pop %v1159
  %vm1163 = vweird.f32 %v965
  %v1164 = vand.u32 %v1160, 3
  %vm1165 = vcmp.lt.s32.totalorder %v1164, 2
  %vm1166 = vcmp.eq.s32.totalorder %v1164, 0
  %v1167 = vxor.u32 %v1162, 2147483648
  %v1168 = vsel %vm1166, %v1161, %v1167
  %vm1169 = vcmp.eq.s32.totalorder %v1164, 2
  %v1170 = vxor.u32 %v1161, 2147483648
  %v1171 = vsel %vm1169, %v1170, %v1162
  %v1172 = vsel %vm1165, %v1168, %v1171
  %v1173 = vsel %vm1163, nan, %v1172
  %v1176 = vunpack.c.l.s4 1983009808
  %v1177 = vunpack.c.0.s8 %v1176
  %v1178 = vlaneseq
  %v1179 = vshrl.u32 %v1178, 7
  %v1180 = vsub.s32 %v1177, %v1179
  %v1181 = vrot.slane %v1173, %v1180
  %1182 = vrot.lane.b32.xlu0 %v1181, 16
  %v1183 = vpop.permute.xlu0 %1182
  %1185 = vst.msk [vmem:[%s2 + $0x2] sm:$0x3] %vm245, %v1183
  %1186 = vset.pattern.permute.xlu0 5
  %1187 = vperm.xlu0 %1186, %v11
  %v1188 = vpop.permute.xlu0 %1187
  %v1190 = vmul.f32 %v1188, %v22
  %v1191 = vand.u32 2147483647, %v1190
  %vm1192 = vcmp.le.f32.partialorder %v1191, 0.7853982
  %vm1193 = vcmp.lt.s32.totalorder %v1190, 0
  %v1194 = vand.u32 %v1190, 2139095040
  %v1195 = vshrl.u32 %v1194, 23
  %v1196 = vsub.s32 %v1195, 127
  %v1197 = vand.u32 2147483647, %v1190
  %v1198 = vand.u32 %v1197, 8388607
  %v1199 = vor.u32 %v1198, 8388608
  %v1200 = vsub.s32 0, %v1199
  %v1201 = vadd.s32 %v1196, 1
  %vm1202 = vcmp.gt.s32.totalorder %v1201, 0
  %v1203 = vsel %vm1202, %v1201, 0
  %v1204 = vshrl.u32 %v1203, 5
  %v1205 = vand.u32 %v1203, 31
  %v1206 = vsub.s32 32, %v1205
  %v1207 = vshrl.u32 683565275, %v1206
  %v1208 = vshll.u32 683565275, %v1205
  %v1209 = vshrl.u32 2475754826, %v1206
  %v1210 = vor.u32 %v1208, %v1209
  %v1211 = vshll.u32 2475754826, %v1205
  %v1212 = vshrl.u32 2131351028, %v1206
  %v1213 = vor.u32 %v1211, %v1212
  %v1214 = vshll.u32 2131351028, %v1205
  %v1215 = vshrl.u32 2102212464, %v1206
  %v1216 = vor.u32 %v1214, %v1215
  %v1217 = vshll.u32 2102212464, %v1205
  %v1218 = vshrl.u32 920167782, %v1206
  %v1219 = vor.u32 %v1217, %v1218
  %v1220 = vshll.u32 920167782, %v1205
  %v1221 = vshrl.u32 1326507024, %v1206
  %v1222 = vor.u32 %v1220, %v1221
  %vm1223 = vcmp.lt.s32.totalorder %v1204, 1
  %vm1224 = vcmp.lt.s32.totalorder %v1204, 2
  %vm1225 = vcmp.lt.s32.totalorder %v1204, 3
  %vm1226 = vcmp.lt.s32.totalorder %v1204, 4
  %v1227 = vsel %vm1223, %v1207, %v1210
  %v1228 = vsel %vm1226, %v1216, 2102212464
  %v1229 = vsel %vm1225, %v1213, %v1228
  %v1230 = vsel %vm1224, %v1227, %v1229
  %v1231 = vsel %vm1223, %v1210, %v1213
  %v1232 = vsel %vm1226, %v1219, 920167782
  %v1233 = vsel %vm1225, %v1216, %v1232
  %v1234 = vsel %vm1224, %v1231, %v1233
  %v1235 = vsel %vm1223, %v1213, %v1216
  %v1236 = vsel %vm1226, %v1222, 1326507024
  %v1237 = vsel %vm1225, %v1219, %v1236
  %v1238 = vsel %vm1224, %v1235, %v1237
  %v1239 = vshll.u32 %v1199, 8
  %v1240 = vmul.u32.u64.compose %v1239, %v1238
  %v1241 = vextract.low.u32 %v1240
  %v1242 = vextract.high.u32 %v1240
  %v1243 = vmul.u32.u64.compose %v1239, %v1234
  %v1244 = vextract.low.u32 %v1243
  %v1245 = vextract.high.u32 %v1243
  %v1246 = vmul.u32 %v1239, %v1230
  %v1247 = vadd.s32 %v1242, %v1244
  %vm1248 = vc.u32 %v1242, %v1244
  %v1249 = vadd.s32 %v1245, 1
  %v1250 = vsel %vm1248, %v1249, %v1245
  %v1251 = vadd.s32 %v1246, %v1250
  %v1252 = vadd.s32 %v1251, 536870912
  %v1253 = vshrl.u32 %v1252, 30
  %v1254 = vshll.u32 %v1253, 30
  %v1255 = vsub.s32 %v1251, %v1254
  %vm1256 = vcmp.lt.s32.totalorder %v1255, 0
  %v1257 = vsub.s32 0, %v1255
  %v1258 = vsel %vm1256, %v1257, %v1255
  %v1259 = vclz %v1258
  %v1260 = vsub.s32 %v1259, 2
  %vm1261 = vcmp.gt.s32.totalorder 0, %v1260
  %v1262 = vsel %vm1261, 0, %v1260
  %v1263 = vsub.s32 32, %v1262
  %v1264 = vshll.u32 %v1255, %v1262
  %v1265 = vshrl.u32 %v1247, %v1263
  %v1266 = vor.u32 %v1264, %v1265
  %v1267 = vsub.s32 4294967266, %v1262
  %v1268 = vadd.s32 %v1267, 127
  %v1269 = vshll.u32 %v1268, 23
  %v1270 = vor.u32 4788187, %v1269
  %v1271 = vand.u32 2147483647, %v1270
  %v1273 = vcvt.s32.f32 %v1266
  %v1274 = vmul.f32 %v1273, %v1271
  %v1275 = vxor.u32 %v1274, 2147483648
  %v1276 = vsel %vm1193, %v1275, %v1274
  %v1277 = vsub.s32 4, %v1253
  %v1278 = vsel %vm1193, %v1277, %v1253
  %v1279 = vsel %vm1192, %v1190, %v1276
  %v1280 = vsel %vm1192, 0, %v1278
  %v1281 = vcosq.f32.pop %v1279
  %v1282 = vsinq.f32.pop %v1279
  %vm1283 = vweird.f32 %v1190
  %v1284 = vadd.s32 %v1280, 3
  %v1285 = vand.u32 %v1284, 3
  %vm1286 = vcmp.lt.s32.totalorder %v1285, 2
  %vm1287 = vcmp.eq.s32.totalorder %v1285, 0
  %v1288 = vxor.u32 %v1282, 2147483648
  %v1289 = vsel %vm1287, %v1281, %v1288
  %vm1290 = vcmp.eq.s32.totalorder %v1285, 2
  %v1291 = vxor.u32 %v1281, 2147483648
  %v1292 = vsel %vm1290, %v1291, %v1282
  %v1293 = vsel %vm1286, %v1289, %v1292
  %v1294 = vsel %vm1283, nan, %v1293
  %v1297 = vunpack.c.l.s4 1983009808
  %v1298 = vunpack.c.0.s8 %v1297
  %v1299 = vlaneseq
  %v1300 = vshrl.u32 %v1299, 7
  %v1301 = vsub.s32 %v1298, %v1300
  %v1302 = vrot.slane %v1294, %v1301
  %1303 = vrot.lane.b32.xlu0 %v1302, 32
  %v1304 = vpop.permute.xlu0 %1303
  %1306 = vst.msk [vmem:[%s2 + $0x2] sm:$0x3] %vm367, %v1304
  %v1307 = vand.u32 2147483647, %v1190
  %vm1308 = vcmp.le.f32.partialorder %v1307, 0.7853982
  %vm1309 = vcmp.lt.s32.totalorder %v1190, 0
  %v1310 = vand.u32 %v1190, 2139095040
  %v1311 = vshrl.u32 %v1310, 23
  %v1312 = vsub.s32 %v1311, 127
  %v1313 = vand.u32 2147483647, %v1190
  %v1314 = vand.u32 %v1313, 8388607
  %v1315 = vor.u32 %v1314, 8388608
  %v1316 = vsub.s32 0, %v1315
  %v1317 = vadd.s32 %v1312, 1
  %vm1318 = vcmp.gt.s32.totalorder %v1317, 0
  %v1319 = vsel %vm1318, %v1317, 0
  %v1320 = vshrl.u32 %v1319, 5
  %v1321 = vand.u32 %v1319, 31
  %v1322 = vsub.s32 32, %v1321
  %v1323 = vshrl.u32 683565275, %v1322
  %v1324 = vshll.u32 683565275, %v1321
  %v1325 = vshrl.u32 2475754826, %v1322
  %v1326 = vor.u32 %v1324, %v1325
  %v1327 = vshll.u32 2475754826, %v1321
  %v1328 = vshrl.u32 2131351028, %v1322
  %v1329 = vor.u32 %v1327, %v1328
  %v1330 = vshll.u32 2131351028, %v1321
  %v1331 = vshrl.u32 2102212464, %v1322
  %v1332 = vor.u32 %v1330, %v1331
  %v1333 = vshll.u32 2102212464, %v1321
  %v1334 = vshrl.u32 920167782, %v1322
  %v1335 = vor.u32 %v1333, %v1334
  %v1336 = vshll.u32 920167782, %v1321
  %v1337 = vshrl.u32 1326507024, %v1322
  %v1338 = vor.u32 %v1336, %v1337
  %vm1339 = vcmp.lt.s32.totalorder %v1320, 1
  %vm1340 = vcmp.lt.s32.totalorder %v1320, 2
  %vm1341 = vcmp.lt.s32.totalorder %v1320, 3
  %vm1342 = vcmp.lt.s32.totalorder %v1320, 4
  %v1343 = vsel %vm1339, %v1323, %v1326
  %v1344 = vsel %vm1342, %v1332, 2102212464
  %v1345 = vsel %vm1341, %v1329, %v1344
  %v1346 = vsel %vm1340, %v1343, %v1345
  %v1347 = vsel %vm1339, %v1326, %v1329
  %v1348 = vsel %vm1342, %v1335, 920167782
  %v1349 = vsel %vm1341, %v1332, %v1348
  %v1350 = vsel %vm1340, %v1347, %v1349
  %v1351 = vsel %vm1339, %v1329, %v1332
  %v1352 = vsel %vm1342, %v1338, 1326507024
  %v1353 = vsel %vm1341, %v1335, %v1352
  %v1354 = vsel %vm1340, %v1351, %v1353
  %v1355 = vshll.u32 %v1315, 8
  %v1356 = vmul.u32.u64.compose %v1355, %v1354
  %v1357 = vextract.low.u32 %v1356
  %v1358 = vextract.high.u32 %v1356
  %v1359 = vmul.u32.u64.compose %v1355, %v1350
  %v1360 = vextract.low.u32 %v1359
  %v1361 = vextract.high.u32 %v1359
  %v1362 = vmul.u32 %v1355, %v1346
  %v1363 = vadd.s32 %v1358, %v1360
  %vm1364 = vc.u32 %v1358, %v1360
  %v1365 = vadd.s32 %v1361, 1
  %v1366 = vsel %vm1364, %v1365, %v1361
  %v1367 = vadd.s32 %v1362, %v1366
  %v1368 = vadd.s32 %v1367, 536870912
  %v1369 = vshrl.u32 %v1368, 30
  %v1370 = vshll.u32 %v1369, 30
  %v1371 = vsub.s32 %v1367, %v1370
  %vm1372 = vcmp.lt.s32.totalorder %v1371, 0
  %v1373 = vsub.s32 0, %v1371
  %v1374 = vsel %vm1372, %v1373, %v1371
  %v1375 = vclz %v1374
  %v1376 = vsub.s32 %v1375, 2
  %vm1377 = vcmp.gt.s32.totalorder 0, %v1376
  %v1378 = vsel %vm1377, 0, %v1376
  %v1379 = vsub.s32 32, %v1378
  %v1380 = vshll.u32 %v1371, %v1378
  %v1381 = vshrl.u32 %v1363, %v1379
  %v1382 = vor.u32 %v1380, %v1381
  %v1383 = vsub.s32 4294967266, %v1378
  %v1384 = vadd.s32 %v1383, 127
  %v1385 = vshll.u32 %v1384, 23
  %v1386 = vor.u32 4788187, %v1385
  %v1387 = vand.u32 2147483647, %v1386
  %v1389 = vcvt.s32.f32 %v1382
  %v1390 = vmul.f32 %v1389, %v1387
  %v1391 = vxor.u32 %v1390, 2147483648
  %v1392 = vsel %vm1309, %v1391, %v1390
  %v1393 = vsub.s32 4, %v1369
  %v1394 = vsel %vm1309, %v1393, %v1369
  %v1395 = vsel %vm1308, %v1190, %v1392
  %v1396 = vsel %vm1308, 0, %v1394
  %v1397 = vcosq.f32.pop %v1395
  %v1398 = vsinq.f32.pop %v1395
  %vm1399 = vweird.f32 %v1190
  %v1400 = vand.u32 %v1396, 3
  %vm1401 = vcmp.lt.s32.totalorder %v1400, 2
  %vm1402 = vcmp.eq.s32.totalorder %v1400, 0
  %v1403 = vxor.u32 %v1398, 2147483648
  %v1404 = vsel %vm1402, %v1397, %v1403
  %vm1405 = vcmp.eq.s32.totalorder %v1400, 2
  %v1406 = vxor.u32 %v1397, 2147483648
  %v1407 = vsel %vm1405, %v1406, %v1398
  %v1408 = vsel %vm1401, %v1404, %v1407
  %v1409 = vsel %vm1399, nan, %v1408
  %v1412 = vunpack.c.l.s4 1983009808
  %v1413 = vunpack.c.0.s8 %v1412
  %v1414 = vlaneseq
  %v1415 = vshrl.u32 %v1414, 7
  %v1416 = vsub.s32 %v1413, %v1415
  %v1417 = vrot.slane %v1409, %v1416
  %1418 = vrot.lane.b32.xlu0 %v1417, 48
  %v1419 = vpop.permute.xlu0 %1418
  %1421 = vst.msk [vmem:[%s2 + $0x2] sm:$0x3] %vm483, %v1419
  %1422 = vset.pattern.permute.xlu0 6
  %1423 = vperm.xlu0 %1422, %v11
  %v1424 = vpop.permute.xlu0 %1423
  %v1426 = vmul.f32 %v1424, %v22
  %v1427 = vand.u32 2147483647, %v1426
  %vm1428 = vcmp.le.f32.partialorder %v1427, 0.7853982
  %vm1429 = vcmp.lt.s32.totalorder %v1426, 0
  %v1430 = vand.u32 %v1426, 2139095040
  %v1431 = vshrl.u32 %v1430, 23
  %v1432 = vsub.s32 %v1431, 127
  %v1433 = vand.u32 2147483647, %v1426
  %v1434 = vand.u32 %v1433, 8388607
  %v1435 = vor.u32 %v1434, 8388608
  %v1436 = vsub.s32 0, %v1435
  %v1437 = vadd.s32 %v1432, 1
  %vm1438 = vcmp.gt.s32.totalorder %v1437, 0
  %v1439 = vsel %vm1438, %v1437, 0
  %v1440 = vshrl.u32 %v1439, 5
  %v1441 = vand.u32 %v1439, 31
  %v1442 = vsub.s32 32, %v1441
  %v1443 = vshrl.u32 683565275, %v1442
  %v1444 = vshll.u32 683565275, %v1441
  %v1445 = vshrl.u32 2475754826, %v1442
  %v1446 = vor.u32 %v1444, %v1445
  %v1447 = vshll.u32 2475754826, %v1441
  %v1448 = vshrl.u32 2131351028, %v1442
  %v1449 = vor.u32 %v1447, %v1448
  %v1450 = vshll.u32 2131351028, %v1441
  %v1451 = vshrl.u32 2102212464, %v1442
  %v1452 = vor.u32 %v1450, %v1451
  %v1453 = vshll.u32 2102212464, %v1441
  %v1454 = vshrl.u32 920167782, %v1442
  %v1455 = vor.u32 %v1453, %v1454
  %v1456 = vshll.u32 920167782, %v1441
  %v1457 = vshrl.u32 1326507024, %v1442
  %v1458 = vor.u32 %v1456, %v1457
  %vm1459 = vcmp.lt.s32.totalorder %v1440, 1
  %vm1460 = vcmp.lt.s32.totalorder %v1440, 2
  %vm1461 = vcmp.lt.s32.totalorder %v1440, 3
  %vm1462 = vcmp.lt.s32.totalorder %v1440, 4
  %v1463 = vsel %vm1459, %v1443, %v1446
  %v1464 = vsel %vm1462, %v1452, 2102212464
  %v1465 = vsel %vm1461, %v1449, %v1464
  %v1466 = vsel %vm1460, %v1463, %v1465
  %v1467 = vsel %vm1459, %v1446, %v1449
  %v1468 = vsel %vm1462, %v1455, 920167782
  %v1469 = vsel %vm1461, %v1452, %v1468
  %v1470 = vsel %vm1460, %v1467, %v1469
  %v1471 = vsel %vm1459, %v1449, %v1452
  %v1472 = vsel %vm1462, %v1458, 1326507024
  %v1473 = vsel %vm1461, %v1455, %v1472
  %v1474 = vsel %vm1460, %v1471, %v1473
  %v1475 = vshll.u32 %v1435, 8
  %v1476 = vmul.u32.u64.compose %v1475, %v1474
  %v1477 = vextract.low.u32 %v1476
  %v1478 = vextract.high.u32 %v1476
  %v1479 = vmul.u32.u64.compose %v1475, %v1470
  %v1480 = vextract.low.u32 %v1479
  %v1481 = vextract.high.u32 %v1479
  %v1482 = vmul.u32 %v1475, %v1466
  %v1483 = vadd.s32 %v1478, %v1480
  %vm1484 = vc.u32 %v1478, %v1480
  %v1485 = vadd.s32 %v1481, 1
  %v1486 = vsel %vm1484, %v1485, %v1481
  %v1487 = vadd.s32 %v1482, %v1486
  %v1488 = vadd.s32 %v1487, 536870912
  %v1489 = vshrl.u32 %v1488, 30
  %v1490 = vshll.u32 %v1489, 30
  %v1491 = vsub.s32 %v1487, %v1490
  %vm1492 = vcmp.lt.s32.totalorder %v1491, 0
  %v1493 = vsub.s32 0, %v1491
  %v1494 = vsel %vm1492, %v1493, %v1491
  %v1495 = vclz %v1494
  %v1496 = vsub.s32 %v1495, 2
  %vm1497 = vcmp.gt.s32.totalorder 0, %v1496
  %v1498 = vsel %vm1497, 0, %v1496
  %v1499 = vsub.s32 32, %v1498
  %v1500 = vshll.u32 %v1491, %v1498
  %v1501 = vshrl.u32 %v1483, %v1499
  %v1502 = vor.u32 %v1500, %v1501
  %v1503 = vsub.s32 4294967266, %v1498
  %v1504 = vadd.s32 %v1503, 127
  %v1505 = vshll.u32 %v1504, 23
  %v1506 = vor.u32 4788187, %v1505
  %v1507 = vand.u32 2147483647, %v1506
  %v1509 = vcvt.s32.f32 %v1502
  %v1510 = vmul.f32 %v1509, %v1507
  %v1511 = vxor.u32 %v1510, 2147483648
  %v1512 = vsel %vm1429, %v1511, %v1510
  %v1513 = vsub.s32 4, %v1489
  %v1514 = vsel %vm1429, %v1513, %v1489
  %v1515 = vsel %vm1428, %v1426, %v1512
  %v1516 = vsel %vm1428, 0, %v1514
  %v1517 = vcosq.f32.pop %v1515
  %v1518 = vsinq.f32.pop %v1515
  %vm1519 = vweird.f32 %v1426
  %v1520 = vadd.s32 %v1516, 3
  %v1521 = vand.u32 %v1520, 3
  %vm1522 = vcmp.lt.s32.totalorder %v1521, 2
  %vm1523 = vcmp.eq.s32.totalorder %v1521, 0
  %v1524 = vxor.u32 %v1518, 2147483648
  %v1525 = vsel %vm1523, %v1517, %v1524
  %vm1526 = vcmp.eq.s32.totalorder %v1521, 2
  %v1527 = vxor.u32 %v1517, 2147483648
  %v1528 = vsel %vm1526, %v1527, %v1518
  %v1529 = vsel %vm1522, %v1525, %v1528
  %v1530 = vsel %vm1519, nan, %v1529
  %v1533 = vunpack.c.l.s4 1983009808
  %v1534 = vunpack.c.0.s8 %v1533
  %v1535 = vlaneseq
  %v1536 = vshrl.u32 %v1535, 7
  %v1537 = vsub.s32 %v1534, %v1536
  %v1538 = vrot.slane %v1530, %v1537
  %1539 = vrot.lane.b32.xlu0 %v1538, 64
  %v1540 = vpop.permute.xlu0 %1539
  %1542 = vst.msk [vmem:[%s2 + $0x2] sm:$0x3] %vm605, %v1540
  %v1543 = vand.u32 2147483647, %v1426
  %vm1544 = vcmp.le.f32.partialorder %v1543, 0.7853982
  %vm1545 = vcmp.lt.s32.totalorder %v1426, 0
  %v1546 = vand.u32 %v1426, 2139095040
  %v1547 = vshrl.u32 %v1546, 23
  %v1548 = vsub.s32 %v1547, 127
  %v1549 = vand.u32 2147483647, %v1426
  %v1550 = vand.u32 %v1549, 8388607
  %v1551 = vor.u32 %v1550, 8388608
  %v1552 = vsub.s32 0, %v1551
  %v1553 = vadd.s32 %v1548, 1
  %vm1554 = vcmp.gt.s32.totalorder %v1553, 0
  %v1555 = vsel %vm1554, %v1553, 0
  %v1556 = vshrl.u32 %v1555, 5
  %v1557 = vand.u32 %v1555, 31
  %v1558 = vsub.s32 32, %v1557
  %v1559 = vshrl.u32 683565275, %v1558
  %v1560 = vshll.u32 683565275, %v1557
  %v1561 = vshrl.u32 2475754826, %v1558
  %v1562 = vor.u32 %v1560, %v1561
  %v1563 = vshll.u32 2475754826, %v1557
  %v1564 = vshrl.u32 2131351028, %v1558
  %v1565 = vor.u32 %v1563, %v1564
  %v1566 = vshll.u32 2131351028, %v1557
  %v1567 = vshrl.u32 2102212464, %v1558
  %v1568 = vor.u32 %v1566, %v1567
  %v1569 = vshll.u32 2102212464, %v1557
  %v1570 = vshrl.u32 920167782, %v1558
  %v1571 = vor.u32 %v1569, %v1570
  %v1572 = vshll.u32 920167782, %v1557
  %v1573 = vshrl.u32 1326507024, %v1558
  %v1574 = vor.u32 %v1572, %v1573
  %vm1575 = vcmp.lt.s32.totalorder %v1556, 1
  %vm1576 = vcmp.lt.s32.totalorder %v1556, 2
  %vm1577 = vcmp.lt.s32.totalorder %v1556, 3
  %vm1578 = vcmp.lt.s32.totalorder %v1556, 4
  %v1579 = vsel %vm1575, %v1559, %v1562
  %v1580 = vsel %vm1578, %v1568, 2102212464
  %v1581 = vsel %vm1577, %v1565, %v1580
  %v1582 = vsel %vm1576, %v1579, %v1581
  %v1583 = vsel %vm1575, %v1562, %v1565
  %v1584 = vsel %vm1578, %v1571, 920167782
  %v1585 = vsel %vm1577, %v1568, %v1584
  %v1586 = vsel %vm1576, %v1583, %v1585
  %v1587 = vsel %vm1575, %v1565, %v1568
  %v1588 = vsel %vm1578, %v1574, 1326507024
  %v1589 = vsel %vm1577, %v1571, %v1588
  %v1590 = vsel %vm1576, %v1587, %v1589
  %v1591 = vshll.u32 %v1551, 8
  %v1592 = vmul.u32.u64.compose %v1591, %v1590
  %v1593 = vextract.low.u32 %v1592
  %v1594 = vextract.high.u32 %v1592
  %v1595 = vmul.u32.u64.compose %v1591, %v1586
  %v1596 = vextract.low.u32 %v1595
  %v1597 = vextract.high.u32 %v1595
  %v1598 = vmul.u32 %v1591, %v1582
  %v1599 = vadd.s32 %v1594, %v1596
  %vm1600 = vc.u32 %v1594, %v1596
  %v1601 = vadd.s32 %v1597, 1
  %v1602 = vsel %vm1600, %v1601, %v1597
  %v1603 = vadd.s32 %v1598, %v1602
  %v1604 = vadd.s32 %v1603, 536870912
  %v1605 = vshrl.u32 %v1604, 30
  %v1606 = vshll.u32 %v1605, 30
  %v1607 = vsub.s32 %v1603, %v1606
  %vm1608 = vcmp.lt.s32.totalorder %v1607, 0
  %v1609 = vsub.s32 0, %v1607
  %v1610 = vsel %vm1608, %v1609, %v1607
  %v1611 = vclz %v1610
  %v1612 = vsub.s32 %v1611, 2
  %vm1613 = vcmp.gt.s32.totalorder 0, %v1612
  %v1614 = vsel %vm1613, 0, %v1612
  %v1615 = vsub.s32 32, %v1614
  %v1616 = vshll.u32 %v1607, %v1614
  %v1617 = vshrl.u32 %v1599, %v1615
  %v1618 = vor.u32 %v1616, %v1617
  %v1619 = vsub.s32 4294967266, %v1614
  %v1620 = vadd.s32 %v1619, 127
  %v1621 = vshll.u32 %v1620, 23
  %v1622 = vor.u32 4788187, %v1621
  %v1623 = vand.u32 2147483647, %v1622
  %v1625 = vcvt.s32.f32 %v1618
  %v1626 = vmul.f32 %v1625, %v1623
  %v1627 = vxor.u32 %v1626, 2147483648
  %v1628 = vsel %vm1545, %v1627, %v1626
  %v1629 = vsub.s32 4, %v1605
  %v1630 = vsel %vm1545, %v1629, %v1605
  %v1631 = vsel %vm1544, %v1426, %v1628
  %v1632 = vsel %vm1544, 0, %v1630
  %v1633 = vcosq.f32.pop %v1631
  %v1634 = vsinq.f32.pop %v1631
  %vm1635 = vweird.f32 %v1426
  %v1636 = vand.u32 %v1632, 3
  %vm1637 = vcmp.lt.s32.totalorder %v1636, 2
  %vm1638 = vcmp.eq.s32.totalorder %v1636, 0
  %v1639 = vxor.u32 %v1634, 2147483648
  %v1640 = vsel %vm1638, %v1633, %v1639
  %vm1641 = vcmp.eq.s32.totalorder %v1636, 2
  %v1642 = vxor.u32 %v1633, 2147483648
  %v1643 = vsel %vm1641, %v1642, %v1634
  %v1644 = vsel %vm1637, %v1640, %v1643
  %v1645 = vsel %vm1635, nan, %v1644
  %v1648 = vunpack.c.l.s4 1983009808
  %v1649 = vunpack.c.0.s8 %v1648
  %v1650 = vlaneseq
  %v1651 = vshrl.u32 %v1650, 7
  %v1652 = vsub.s32 %v1649, %v1651
  %v1653 = vrot.slane %v1645, %v1652
  %1654 = vrot.lane.b32.xlu0 %v1653, 80
  %v1655 = vpop.permute.xlu0 %1654
  %1657 = vst.msk [vmem:[%s2 + $0x2] sm:$0x3] %vm721, %v1655
  %1658 = vset.pattern.permute.xlu0 7
  %1659 = vperm.xlu0 %1658, %v11
  %v1660 = vpop.permute.xlu0 %1659
  %v1662 = vmul.f32 %v1660, %v22
  %v1663 = vand.u32 2147483647, %v1662
  %vm1664 = vcmp.le.f32.partialorder %v1663, 0.7853982
  %vm1665 = vcmp.lt.s32.totalorder %v1662, 0
  %v1666 = vand.u32 %v1662, 2139095040
  %v1667 = vshrl.u32 %v1666, 23
  %v1668 = vsub.s32 %v1667, 127
  %v1669 = vand.u32 2147483647, %v1662
  %v1670 = vand.u32 %v1669, 8388607
  %v1671 = vor.u32 %v1670, 8388608
  %v1672 = vsub.s32 0, %v1671
  %v1673 = vadd.s32 %v1668, 1
  %vm1674 = vcmp.gt.s32.totalorder %v1673, 0
  %v1675 = vsel %vm1674, %v1673, 0
  %v1676 = vshrl.u32 %v1675, 5
  %v1677 = vand.u32 %v1675, 31
  %v1678 = vsub.s32 32, %v1677
  %v1679 = vshrl.u32 683565275, %v1678
  %v1680 = vshll.u32 683565275, %v1677
  %v1681 = vshrl.u32 2475754826, %v1678
  %v1682 = vor.u32 %v1680, %v1681
  %v1683 = vshll.u32 2475754826, %v1677
  %v1684 = vshrl.u32 2131351028, %v1678
  %v1685 = vor.u32 %v1683, %v1684
  %v1686 = vshll.u32 2131351028, %v1677
  %v1687 = vshrl.u32 2102212464, %v1678
  %v1688 = vor.u32 %v1686, %v1687
  %v1689 = vshll.u32 2102212464, %v1677
  %v1690 = vshrl.u32 920167782, %v1678
  %v1691 = vor.u32 %v1689, %v1690
  %v1692 = vshll.u32 920167782, %v1677
  %v1693 = vshrl.u32 1326507024, %v1678
  %v1694 = vor.u32 %v1692, %v1693
  %vm1695 = vcmp.lt.s32.totalorder %v1676, 1
  %vm1696 = vcmp.lt.s32.totalorder %v1676, 2
  %vm1697 = vcmp.lt.s32.totalorder %v1676, 3
  %vm1698 = vcmp.lt.s32.totalorder %v1676, 4
  %v1699 = vsel %vm1695, %v1679, %v1682
  %v1700 = vsel %vm1698, %v1688, 2102212464
  %v1701 = vsel %vm1697, %v1685, %v1700
  %v1702 = vsel %vm1696, %v1699, %v1701
  %v1703 = vsel %vm1695, %v1682, %v1685
  %v1704 = vsel %vm1698, %v1691, 920167782
  %v1705 = vsel %vm1697, %v1688, %v1704
  %v1706 = vsel %vm1696, %v1703, %v1705
  %v1707 = vsel %vm1695, %v1685, %v1688
  %v1708 = vsel %vm1698, %v1694, 1326507024
  %v1709 = vsel %vm1697, %v1691, %v1708
  %v1710 = vsel %vm1696, %v1707, %v1709
  %v1711 = vshll.u32 %v1671, 8
  %v1712 = vmul.u32.u64.compose %v1711, %v1710
  %v1713 = vextract.low.u32 %v1712
  %v1714 = vextract.high.u32 %v1712
  %v1715 = vmul.u32.u64.compose %v1711, %v1706
  %v1716 = vextract.low.u32 %v1715
  %v1717 = vextract.high.u32 %v1715
  %v1718 = vmul.u32 %v1711, %v1702
  %v1719 = vadd.s32 %v1714, %v1716
  %vm1720 = vc.u32 %v1714, %v1716
  %v1721 = vadd.s32 %v1717, 1
  %v1722 = vsel %vm1720, %v1721, %v1717
  %v1723 = vadd.s32 %v1718, %v1722
  %v1724 = vadd.s32 %v1723, 536870912
  %v1725 = vshrl.u32 %v1724, 30
  %v1726 = vshll.u32 %v1725, 30
  %v1727 = vsub.s32 %v1723, %v1726
  %vm1728 = vcmp.lt.s32.totalorder %v1727, 0
  %v1729 = vsub.s32 0, %v1727
  %v1730 = vsel %vm1728, %v1729, %v1727
  %v1731 = vclz %v1730
  %v1732 = vsub.s32 %v1731, 2
  %vm1733 = vcmp.gt.s32.totalorder 0, %v1732
  %v1734 = vsel %vm1733, 0, %v1732
  %v1735 = vsub.s32 32, %v1734
  %v1736 = vshll.u32 %v1727, %v1734
  %v1737 = vshrl.u32 %v1719, %v1735
  %v1738 = vor.u32 %v1736, %v1737
  %v1739 = vsub.s32 4294967266, %v1734
  %v1740 = vadd.s32 %v1739, 127
  %v1741 = vshll.u32 %v1740, 23
  %v1742 = vor.u32 4788187, %v1741
  %v1743 = vand.u32 2147483647, %v1742
  %v1745 = vcvt.s32.f32 %v1738
  %v1746 = vmul.f32 %v1745, %v1743
  %v1747 = vxor.u32 %v1746, 2147483648
  %v1748 = vsel %vm1665, %v1747, %v1746
  %v1749 = vsub.s32 4, %v1725
  %v1750 = vsel %vm1665, %v1749, %v1725
  %v1751 = vsel %vm1664, %v1662, %v1748
  %v1752 = vsel %vm1664, 0, %v1750
  %v1753 = vcosq.f32.pop %v1751
  %v1754 = vsinq.f32.pop %v1751
  %vm1755 = vweird.f32 %v1662
  %v1756 = vadd.s32 %v1752, 3
  %v1757 = vand.u32 %v1756, 3
  %vm1758 = vcmp.lt.s32.totalorder %v1757, 2
  %vm1759 = vcmp.eq.s32.totalorder %v1757, 0
  %v1760 = vxor.u32 %v1754, 2147483648
  %v1761 = vsel %vm1759, %v1753, %v1760
  %vm1762 = vcmp.eq.s32.totalorder %v1757, 2
  %v1763 = vxor.u32 %v1753, 2147483648
  %v1764 = vsel %vm1762, %v1763, %v1754
  %v1765 = vsel %vm1758, %v1761, %v1764
  %v1766 = vsel %vm1755, nan, %v1765
  %v1769 = vunpack.c.l.s4 1983009808
  %v1770 = vunpack.c.0.s8 %v1769
  %v1771 = vlaneseq
  %v1772 = vshrl.u32 %v1771, 7
  %v1773 = vsub.s32 %v1770, %v1772
  %v1774 = vrot.slane %v1766, %v1773
  %1775 = vrot.lane.b32.xlu0 %v1774, 96
  %v1776 = vpop.permute.xlu0 %1775
  %1778 = vst.msk [vmem:[%s2 + $0x2] sm:$0x3] %vm843, %v1776
  %v1779 = vand.u32 2147483647, %v1662
  %vm1780 = vcmp.le.f32.partialorder %v1779, 0.7853982
  %vm1781 = vcmp.lt.s32.totalorder %v1662, 0
  %v1782 = vand.u32 %v1662, 2139095040
  %v1783 = vshrl.u32 %v1782, 23
  %v1784 = vsub.s32 %v1783, 127
  %v1785 = vand.u32 2147483647, %v1662
  %v1786 = vand.u32 %v1785, 8388607
  %v1787 = vor.u32 %v1786, 8388608
  %v1788 = vsub.s32 0, %v1787
  %v1789 = vadd.s32 %v1784, 1
  %vm1790 = vcmp.gt.s32.totalorder %v1789, 0
  %v1791 = vsel %vm1790, %v1789, 0
  %v1792 = vshrl.u32 %v1791, 5
  %v1793 = vand.u32 %v1791, 31
  %v1794 = vsub.s32 32, %v1793
  %v1795 = vshrl.u32 683565275, %v1794
  %v1796 = vshll.u32 683565275, %v1793
  %v1797 = vshrl.u32 2475754826, %v1794
  %v1798 = vor.u32 %v1796, %v1797
  %v1799 = vshll.u32 2475754826, %v1793
  %v1800 = vshrl.u32 2131351028, %v1794
  %v1801 = vor.u32 %v1799, %v1800
  %v1802 = vshll.u32 2131351028, %v1793
  %v1803 = vshrl.u32 2102212464, %v1794
  %v1804 = vor.u32 %v1802, %v1803
  %v1805 = vshll.u32 2102212464, %v1793
  %v1806 = vshrl.u32 920167782, %v1794
  %v1807 = vor.u32 %v1805, %v1806
  %v1808 = vshll.u32 920167782, %v1793
  %v1809 = vshrl.u32 1326507024, %v1794
  %v1810 = vor.u32 %v1808, %v1809
  %vm1811 = vcmp.lt.s32.totalorder %v1792, 1
  %vm1812 = vcmp.lt.s32.totalorder %v1792, 2
  %vm1813 = vcmp.lt.s32.totalorder %v1792, 3
  %vm1814 = vcmp.lt.s32.totalorder %v1792, 4
  %v1815 = vsel %vm1811, %v1795, %v1798
  %v1816 = vsel %vm1814, %v1804, 2102212464
  %v1817 = vsel %vm1813, %v1801, %v1816
  %v1818 = vsel %vm1812, %v1815, %v1817
  %v1819 = vsel %vm1811, %v1798, %v1801
  %v1820 = vsel %vm1814, %v1807, 920167782
  %v1821 = vsel %vm1813, %v1804, %v1820
  %v1822 = vsel %vm1812, %v1819, %v1821
  %v1823 = vsel %vm1811, %v1801, %v1804
  %v1824 = vsel %vm1814, %v1810, 1326507024
  %v1825 = vsel %vm1813, %v1807, %v1824
  %v1826 = vsel %vm1812, %v1823, %v1825
  %v1827 = vshll.u32 %v1787, 8
  %v1828 = vmul.u32.u64.compose %v1827, %v1826
  %v1829 = vextract.low.u32 %v1828
  %v1830 = vextract.high.u32 %v1828
  %v1831 = vmul.u32.u64.compose %v1827, %v1822
  %v1832 = vextract.low.u32 %v1831
  %v1833 = vextract.high.u32 %v1831
  %v1834 = vmul.u32 %v1827, %v1818
  %v1835 = vadd.s32 %v1830, %v1832
  %vm1836 = vc.u32 %v1830, %v1832
  %v1837 = vadd.s32 %v1833, 1
  %v1838 = vsel %vm1836, %v1837, %v1833
  %v1839 = vadd.s32 %v1834, %v1838
  %v1840 = vadd.s32 %v1839, 536870912
  %v1841 = vshrl.u32 %v1840, 30
  %v1842 = vshll.u32 %v1841, 30
  %v1843 = vsub.s32 %v1839, %v1842
  %vm1844 = vcmp.lt.s32.totalorder %v1843, 0
  %v1845 = vsub.s32 0, %v1843
  %v1846 = vsel %vm1844, %v1845, %v1843
  %v1847 = vclz %v1846
  %v1848 = vsub.s32 %v1847, 2
  %vm1849 = vcmp.gt.s32.totalorder 0, %v1848
  %v1850 = vsel %vm1849, 0, %v1848
  %v1851 = vsub.s32 32, %v1850
  %v1852 = vshll.u32 %v1843, %v1850
  %v1853 = vshrl.u32 %v1835, %v1851
  %v1854 = vor.u32 %v1852, %v1853
  %v1855 = vsub.s32 4294967266, %v1850
  %v1856 = vadd.s32 %v1855, 127
  %v1857 = vshll.u32 %v1856, 23
  %v1858 = vor.u32 4788187, %v1857
  %v1859 = vand.u32 2147483647, %v1858
  %v1861 = vcvt.s32.f32 %v1854
  %v1862 = vmul.f32 %v1861, %v1859
  %v1863 = vxor.u32 %v1862, 2147483648
  %v1864 = vsel %vm1781, %v1863, %v1862
  %v1865 = vsub.s32 4, %v1841
  %v1866 = vsel %vm1781, %v1865, %v1841
  %v1867 = vsel %vm1780, %v1662, %v1864
  %v1868 = vsel %vm1780, 0, %v1866
  %v1869 = vcosq.f32.pop %v1867
  %v1870 = vsinq.f32.pop %v1867
  %vm1871 = vweird.f32 %v1662
  %v1872 = vand.u32 %v1868, 3
  %vm1873 = vcmp.lt.s32.totalorder %v1872, 2
  %vm1874 = vcmp.eq.s32.totalorder %v1872, 0
  %v1875 = vxor.u32 %v1870, 2147483648
  %v1876 = vsel %vm1874, %v1869, %v1875
  %vm1877 = vcmp.eq.s32.totalorder %v1872, 2
  %v1878 = vxor.u32 %v1869, 2147483648
  %v1879 = vsel %vm1877, %v1878, %v1870
  %v1880 = vsel %vm1873, %v1876, %v1879
  %v1881 = vsel %vm1871, nan, %v1880
  %v1884 = vunpack.c.l.s4 1983009808
  %v1885 = vunpack.c.0.s8 %v1884
  %v1886 = vlaneseq
  %v1887 = vshrl.u32 %v1886, 7
  %v1888 = vsub.s32 %v1885, %v1887
  %v1889 = vrot.slane %v1881, %v1888
  %1890 = vrot.lane.b32.xlu0 %v1889, 112
  %v1891 = vpop.permute.xlu0 %1890
  %1893 = vst.msk [vmem:[%s2 + $0x2] sm:$0x3] %vm959, %v1891
  // Predicated region
  $region10: #{order_embedding.1} parent=0 // pred_check
    _
  $region11: #{order_embedding.1} parent=0 // pred_check_branch
    %1895 = sbr.rel (0) target = $region13
  $region12: #{order_embedding.1} parent=0 // pred_region
    _
  $region13: #{order_embedding.1} parent=0 // pred_fallthru
    _
  // Predicated region
  $region14: #{order_embedding.1} parent=0 // pred_check
    _
  $region15: #{order_embedding.1} parent=0 // pred_check_branch
    %1897 = sbr.rel (0) target = $region17
  $region16: #{order_embedding.1} parent=0 // pred_region
    _
  $region17: #{order_embedding.1} parent=0 // pred_fallthru
    _

</llo_original>
